<compile_context>
chip_gen: v7x
topology: tpu7x:2x2x1
jax: 0.10.0
libtpu: 0.0.40
codegen_flags: <defaults>
</compile_context>

<pallas_src>
import math

import jax
import jax.numpy as jnp
import numpy as np
from jax.experimental import pallas as pl
from jax.experimental.pallas import tpu as pltpu

EPS = 1e-5  # PyTorch nn.LayerNorm default eps


def _erf(x):
    # Abramowitz & Stegun 7.1.26 approximation of erf (abs err < 1.5e-7);
    # built only from exp/abs/mul/add/div so it lowers cleanly in Mosaic.
    a1, a2, a3, a4, a5 = 0.254829592, -0.284496736, 1.421413741, -1.453152027, 1.061405429
    p = 0.3275911
    sign = jnp.where(x >= 0.0, 1.0, -1.0)
    ax = jnp.abs(x)
    t = 1.0 / (1.0 + p * ax)
    poly = ((((a5 * t + a4) * t + a3) * t + a2) * t + a1) * t
    return sign * (1.0 - poly * jnp.exp(-ax * ax))


def _gelu_exact(x):
    # PyTorch nn.GELU() default (approximate='none'): x * 0.5 * (1 + erf(x/sqrt(2)))
    return x * 0.5 * (1.0 + _erf(x * (1.0 / math.sqrt(2.0))))


def _layernorm(x, gamma, beta):
    mu = jnp.mean(x, axis=-1, keepdims=True)
    var = jnp.mean((x - mu) ** 2, axis=-1, keepdims=True)
    return (x - mu) * jax.lax.rsqrt(var + EPS) * gamma + beta


def _head_softmax(x, head_mask):
    # Per-head softmax over the lane axis WITHOUT per-head lane slicing:
    #  - subtracting the row max is mathematically identical to subtracting the
    #    per-head max (it is constant within each head segment), and keeps exp stable;
    #  - the per-head sums (broadcast back to every lane of the head) come from a
    #    single MXU matmul with the block-diagonal same-head mask.
    m = jnp.max(x, axis=-1, keepdims=True)
    e = jnp.exp(x - m)
    denom = jnp.dot(e, head_mask, preferred_element_type=jnp.float32)
    return e / denom


def trans_decoder_kernel(x1_ref, x2_ref, mask_ref,
                         g1_ref, be1_ref, g2_ref, be2_ref,
                         wq_ref, bq_ref, wk_ref, bk_ref, wv_ref, bv_ref,
                         wh_ref, bh_ref,
                         gf_ref, bef_ref, w1_ref, b1_ref, w2_ref, b2_ref,
                         o_ref, x_scr):
    """One (batch element, layer) step of the fused TransDecoder stack."""
    l = pl.program_id(1)

    # Load this batch element's input into the resident activation scratch
    # at the first layer; subsequent layers read/write the scratch only.
    @pl.when(l == 0)
    def _():
        x_scr[...] = x1_ref[0]

    x1 = x_scr[...]            # (T, D) running activation
    x2 = x2_ref[0]             # (N, L) conditioning (constant across layers)
    mask = mask_ref[...]       # (D, D) same-head block-diagonal mask

    # Layer-l parameters: dynamic slice along the stacked (VMEM-resident) axis.
    g1, be1 = g1_ref[l], be1_ref[l]
    g2, be2 = g2_ref[l], be2_ref[l]
    wq, bq = wq_ref[l], bq_ref[l]
    wk, bk = wk_ref[l], bk_ref[l]
    wv, bv = wv_ref[l], bv_ref[l]
    wh, bh = wh_ref[l], bh_ref[l]
    gf, bef = gf_ref[l], bef_ref[l]
    w1, b1 = w1_ref[l], b1_ref[l]
    w2, b2 = w2_ref[l], b2_ref[l]

    # ---------------- EfficientCrossAttention ----------------
    nx1 = _layernorm(x1, g1, be1)
    nx2 = _layernorm(x2, g2, be2)

    q = jnp.dot(nx1, wq, preferred_element_type=jnp.float32) + bq   # (T, D)
    k = jnp.dot(nx2, wk, preferred_element_type=jnp.float32) + bk   # (N, D)
    v = jnp.dot(nx2, wv, preferred_element_type=jnp.float32) + bv   # (N, D)

    qs = _head_softmax(q, mask)      # softmax over each head's dh lanes
    ks = _head_softmax(k, mask)

    # att = block-diagonal part of K^T V: packs einsum('nhd,nhl->hdl') into (D, D),
    # so y = qs @ att is a single full-width matmul (no head loop / concat).
    att = jax.lax.dot_general(ks, v, (((0,), (0,)), ((), ())),
                              preferred_element_type=jnp.float32) * mask
    # TODO(synk): dropout is identity here (inference/eval mode); train-mode
    # stochastic masking is not implemented.
    y = jnp.dot(qs, att, preferred_element_type=jnp.float32)
    y = jnp.dot(x1, wh, preferred_element_type=jnp.float32) + bh + y

    # ------------------------- FFN ----------------------------
    ny = _layernorm(y, gf, bef)
    h1 = _gelu_exact(jnp.dot(ny, w1, preferred_element_type=jnp.float32) + b1)
    y2 = jnp.dot(h1, w2, preferred_element_type=jnp.float32) + b2

    x_new = y + y2
    x_scr[...] = x_new
    o_ref[0] = x_new           # HBM writeback happens only when the batch block changes


_PARAM_NAMES = ("g1", "be1", "g2", "be2", "wq", "bq", "wk", "bk", "wv", "bv",
                "wh", "bh", "gf", "bef", "w1", "b1f", "w2", "b2f")


def trans_decoder(src, cond, layer_params, nhead):
    B, T, D = src.shape
    _, N, L = cond.shape
    num_layers = len(layer_params)
    dh = D // nhead

    # Stack every parameter across a leading num_layers axis; the whole stack
    # stays resident in VMEM for the single fused pallas_call.
    stacked = [jnp.stack([p[name] for p in layer_params], axis=0)
               for name in _PARAM_NAMES]

    # Block-diagonal head mask: mask[i, j] = 1 iff lanes i and j are in the same head.
    heads = np.arange(D) // dh
    head_mask = jnp.asarray((heads[:, None] == heads[None, :]).astype(np.float32))

    def full_spec(arr):
        nd = arr.ndim
        return pl.BlockSpec(arr.shape, lambda b, l, _nd=nd: (0,) * _nd)

    in_specs = ([pl.BlockSpec((1, T, D), lambda b, l: (b, 0, 0)),
                 pl.BlockSpec((1, N, L), lambda b, l: (b, 0, 0)),
                 full_spec(head_mask)]
                + [full_spec(w) for w in stacked])

    return pl.pallas_call(
        trans_decoder_kernel,
        grid=(B, num_layers),
        in_specs=in_specs,
        out_specs=pl.BlockSpec((1, T, D), lambda b, l: (b, 0, 0)),
        out_shape=jax.ShapeDtypeStruct((B, T, D), jnp.float32),
        scratch_shapes=[pltpu.VMEM((T, D), jnp.float32)],
        compiler_params=pltpu.CompilerParams(
            dimension_semantics=("parallel", "arbitrary")),
    )(src, cond, head_mask, *stacked)


def init_params(key, num_layers, D, L, F):
    """Deterministic synthetic parameters matching the module's shapes."""
    layers = []
    s = 0.05
    for _ in range(num_layers):
        key, *ks = jax.random.split(key, 11)
        layers.append(dict(
            g1=jnp.ones((1, D), jnp.float32), be1=jnp.zeros((1, D), jnp.float32),
            g2=jnp.ones((1, L), jnp.float32), be2=jnp.zeros((1, L), jnp.float32),
            wq=(jax.random.normal(ks[0], (D, D)) * s).astype(jnp.float32),
            bq=(jax.random.normal(ks[1], (1, D)) * s).astype(jnp.float32),
            wk=(jax.random.normal(ks[2], (L, D)) * s).astype(jnp.float32),
            bk=(jax.random.normal(ks[3], (1, D)) * s).astype(jnp.float32),
            wv=(jax.random.normal(ks[4], (L, D)) * s).astype(jnp.float32),
            bv=(jax.random.normal(ks[5], (1, D)) * s).astype(jnp.float32),
            wh=(jax.random.normal(ks[6], (D, D)) * s).astype(jnp.float32),
            bh=(jax.random.normal(ks[7], (1, D)) * s).astype(jnp.float32),
            gf=jnp.ones((1, D), jnp.float32), bef=jnp.zeros((1, D), jnp.float32),
            w1=(jax.random.normal(ks[8], (D, F)) * s).astype(jnp.float32),
            b1f=(jax.random.normal(ks[9], (1, F)) * s).astype(jnp.float32),
            # zero_module(nn.Linear(hidden_dim, embed_dim)):
            w2=jnp.zeros((F, D), jnp.float32),
            b2f=jnp.zeros((1, D), jnp.float32),
        ))
    return layers


def reference(src, cond, layer_params, nhead):
    """Pure-JAX reference mirroring the PyTorch forward (eval mode)."""
    def ln(x, g, b):
        mu = x.mean(-1, keepdims=True)
        var = ((x - mu) ** 2).mean(-1, keepdims=True)
        return (x - mu) / jnp.sqrt(var + EPS) * g + b

    x1 = src
    for p in layer_params:
        B, T, D = x1.shape
        N = cond.shape[1]
        H = nhead
        nx1 = ln(x1, p["g1"], p["be1"])
        nx2 = ln(cond, p["g2"], p["be2"])
        q = (nx1 @ p["wq"] + p["bq"]).reshape(B, T, H, -1)
        k = (nx2 @ p["wk"] + p["bk"]).reshape(B, N, H, -1)
        v = (nx2 @ p["wv"] + p["bv"]).reshape(B, N, H, -1)
        q = jax.nn.softmax(q, axis=-1)
        k = jax.nn.softmax(k, axis=-1)
        att = jnp.einsum('bnhd,bnhl->bhdl', k, v)
        y = jnp.einsum('bthd,bhdl->bthl', q, att).reshape(B, T, D)
        y = x1 @ p["wh"] + p["bh"] + y
        ny = ln(y, p["gf"], p["bef"])
        h1 = jax.nn.gelu(ny @ p["w1"] + p["b1f"], approximate=False)
        y2 = h1 @ p["w2"] + p["b2f"]
        x1 = y + y2
    return x1


if __name__ == "__main__":
    # Small shapes consistent with TransDecoder(embed_dim=32, cond_dim=32, nhead=4)
    B, T, N = 2, 8, 8
    D = 32            # embed_dim
    L = 32            # cond_dim
    NHEAD = 4
    FFN_DIM = 2 * D   # embed_dim * 2 (per ECALayer construction)
    NUM_LAYERS = 2

    key = jax.random.PRNGKey(0)
    k_src, k_cond, k_par = jax.random.split(key, 3)
    src = jax.random.normal(k_src, (B, T, D), jnp.float32)
    cond = jax.random.normal(k_cond, (B, N, L), jnp.float32)
    params = init_params(k_par, NUM_LAYERS, D, L, FFN_DIM)

    out = trans_decoder(src, cond, params, NHEAD)
    out = jax.block_until_ready(out)

    with jax.default_matmul_precision("highest"):
        ref = jax.block_until_ready(reference(src, cond, params, NHEAD))

    np.testing.assert_allclose(np.asarray(out), np.asarray(ref), atol=1e-4, rtol=1e-4)
    print("KERNEL_OK")
</pallas_src>

<mosaic_0001>
module attributes {stable_mosaic.version = 11 : i64} {
  func.func @trans_decoder_kernel(%arg0: i32, %arg1: i32, %arg2: memref<1x8x32xf32, #tpu.memory_space<vmem>>, %arg3: memref<1x8x32xf32, #tpu.memory_space<vmem>>, %arg4: memref<32x32xf32, #tpu.memory_space<vmem>>, %arg5: memref<2x1x32xf32, #tpu.memory_space<vmem>>, %arg6: memref<2x1x32xf32, #tpu.memory_space<vmem>>, %arg7: memref<2x1x32xf32, #tpu.memory_space<vmem>>, %arg8: memref<2x1x32xf32, #tpu.memory_space<vmem>>, %arg9: memref<2x32x32xf32, #tpu.memory_space<vmem>>, %arg10: memref<2x1x32xf32, #tpu.memory_space<vmem>>, %arg11: memref<2x32x32xf32, #tpu.memory_space<vmem>>, %arg12: memref<2x1x32xf32, #tpu.memory_space<vmem>>, %arg13: memref<2x32x32xf32, #tpu.memory_space<vmem>>, %arg14: memref<2x1x32xf32, #tpu.memory_space<vmem>>, %arg15: memref<2x32x32xf32, #tpu.memory_space<vmem>>, %arg16: memref<2x1x32xf32, #tpu.memory_space<vmem>>, %arg17: memref<2x1x32xf32, #tpu.memory_space<vmem>>, %arg18: memref<2x1x32xf32, #tpu.memory_space<vmem>>, %arg19: memref<2x32x64xf32, #tpu.memory_space<vmem>>, %arg20: memref<2x1x64xf32, #tpu.memory_space<vmem>>, %arg21: memref<2x64x32xf32, #tpu.memory_space<vmem>>, %arg22: memref<2x1x32xf32, #tpu.memory_space<vmem>>, %arg23: memref<1x8x32xf32, #tpu.memory_space<vmem>>, %arg24: memref<8x32xf32, #tpu.memory_space<vmem>>) attributes {dimension_semantics = [#tpu.dimension_semantics<parallel>, #tpu.dimension_semantics<arbitrary>], iteration_bounds = array<i64: 2, 2>, scalar_prefetch = 0 : i64, scratch_operands = 1 : i64, tpu.core_type = #tpu.core_type<tc>, window_params = [{transform_indices = @transform_0, window_bounds = array<i64: 1, 8, 32>}, {transform_indices = @transform_1, window_bounds = array<i64: 1, 8, 32>}, {pipeline_mode = #tpu.pipeline_mode<synchronous>, transform_indices = @transform_2, window_bounds = array<i64: 32, 32>}, {pipeline_mode = #tpu.pipeline_mode<synchronous>, transform_indices = @transform_3, window_bounds = array<i64: 2, 1, 32>}, {pipeline_mode = #tpu.pipeline_mode<synchronous>, transform_indices = @transform_4, window_bounds = array<i64: 2, 1, 32>}, {pipeline_mode = #tpu.pipeline_mode<synchronous>, transform_indices = @transform_5, window_bounds = array<i64: 2, 1, 32>}, {pipeline_mode = #tpu.pipeline_mode<synchronous>, transform_indices = @transform_6, window_bounds = array<i64: 2, 1, 32>}, {pipeline_mode = #tpu.pipeline_mode<synchronous>, transform_indices = @transform_7, window_bounds = array<i64: 2, 32, 32>}, {pipeline_mode = #tpu.pipeline_mode<synchronous>, transform_indices = @transform_8, window_bounds = array<i64: 2, 1, 32>}, {pipeline_mode = #tpu.pipeline_mode<synchronous>, transform_indices = @transform_9, window_bounds = array<i64: 2, 32, 32>}, {pipeline_mode = #tpu.pipeline_mode<synchronous>, transform_indices = @transform_10, window_bounds = array<i64: 2, 1, 32>}, {pipeline_mode = #tpu.pipeline_mode<synchronous>, transform_indices = @transform_11, window_bounds = array<i64: 2, 32, 32>}, {pipeline_mode = #tpu.pipeline_mode<synchronous>, transform_indices = @transform_12, window_bounds = array<i64: 2, 1, 32>}, {pipeline_mode = #tpu.pipeline_mode<synchronous>, transform_indices = @transform_13, window_bounds = array<i64: 2, 32, 32>}, {pipeline_mode = #tpu.pipeline_mode<synchronous>, transform_indices = @transform_14, window_bounds = array<i64: 2, 1, 32>}, {pipeline_mode = #tpu.pipeline_mode<synchronous>, transform_indices = @transform_15, window_bounds = array<i64: 2, 1, 32>}, {pipeline_mode = #tpu.pipeline_mode<synchronous>, transform_indices = @transform_16, window_bounds = array<i64: 2, 1, 32>}, {pipeline_mode = #tpu.pipeline_mode<synchronous>, transform_indices = @transform_17, window_bounds = array<i64: 2, 32, 64>}, {pipeline_mode = #tpu.pipeline_mode<synchronous>, transform_indices = @transform_18, window_bounds = array<i64: 2, 1, 64>}, {pipeline_mode = #tpu.pipeline_mode<synchronous>, transform_indices = @transform_19, window_bounds = array<i64: 2, 64, 32>}, {pipeline_mode = #tpu.pipeline_mode<synchronous>, transform_indices = @transform_20, window_bounds = array<i64: 2, 1, 32>}, {transform_indices = @transform_21, window_bounds = array<i64: 1, 8, 32>}]} {
    %c0_i32 = arith.constant 0 : i32
    %0 = arith.cmpi eq, %arg1, %c0_i32 : i32
    %1 = arith.extui %0 : i1 to i32
    %c0_i32_0 = arith.constant 0 : i32
    %2 = arith.cmpi ne, %1, %c0_i32_0 : i32
    scf.if %2 {
      %c0_90 = arith.constant 0 : index
      %c0_91 = arith.constant 0 : index
      %c0_92 = arith.constant 0 : index
      %209 = vector.load %arg2[%c0_90, %c0_91, %c0_92] : memref<1x8x32xf32, #tpu.memory_space<vmem>>, vector<1x8x32xf32>
      %210 = vector.shape_cast %209 : vector<1x8x32xf32> to vector<8x32xf32>
      %c0_93 = arith.constant 0 : index
      %c0_94 = arith.constant 0 : index
      %211 = vector.load %arg24[%c0_93, %c0_94] : memref<8x32xf32, #tpu.memory_space<vmem>>, vector<8x32xf32>
      tpu.vector_store %arg24[%c0_93, %c0_94], %210 {strides = array<i32>} : memref<8x32xf32, #tpu.memory_space<vmem>>, vector<8x32xf32>,
    } else {
    }
    %c0 = arith.constant 0 : index
    %c0_1 = arith.constant 0 : index
    %3 = vector.load %arg24[%c0, %c0_1] : memref<8x32xf32, #tpu.memory_space<vmem>>, vector<8x32xf32>
    %c0_2 = arith.constant 0 : index
    %c0_3 = arith.constant 0 : index
    %c0_4 = arith.constant 0 : index
    %4 = vector.load %arg3[%c0_2, %c0_3, %c0_4] : memref<1x8x32xf32, #tpu.memory_space<vmem>>, vector<1x8x32xf32>
    %5 = vector.shape_cast %4 : vector<1x8x32xf32> to vector<8x32xf32>
    %c0_5 = arith.constant 0 : index
    %c0_6 = arith.constant 0 : index
    %6 = vector.load %arg4[%c0_5, %c0_6] : memref<32x32xf32, #tpu.memory_space<vmem>>, vector<32x32xf32>
    %7 = arith.index_cast %arg1 : i32 to index
    %c0_7 = arith.constant 0 : index
    %c0_8 = arith.constant 0 : index
    %8 = vector.load %arg5[%7, %c0_7, %c0_8] : memref<2x1x32xf32, #tpu.memory_space<vmem>>, vector<1x1x32xf32>
    %9 = vector.shape_cast %8 : vector<1x1x32xf32> to vector<1x32xf32>
    %10 = arith.index_cast %arg1 : i32 to index
    %c0_9 = arith.constant 0 : index
    %c0_10 = arith.constant 0 : index
    %11 = vector.load %arg6[%10, %c0_9, %c0_10] : memref<2x1x32xf32, #tpu.memory_space<vmem>>, vector<1x1x32xf32>
    %12 = vector.shape_cast %11 : vector<1x1x32xf32> to vector<1x32xf32>
    %13 = arith.index_cast %arg1 : i32 to index
    %c0_11 = arith.constant 0 : index
    %c0_12 = arith.constant 0 : index
    %14 = vector.load %arg7[%13, %c0_11, %c0_12] : memref<2x1x32xf32, #tpu.memory_space<vmem>>, vector<1x1x32xf32>
    %15 = vector.shape_cast %14 : vector<1x1x32xf32> to vector<1x32xf32>
    %16 = arith.index_cast %arg1 : i32 to index
    %c0_13 = arith.constant 0 : index
    %c0_14 = arith.constant 0 : index
    %17 = vector.load %arg8[%16, %c0_13, %c0_14] : memref<2x1x32xf32, #tpu.memory_space<vmem>>, vector<1x1x32xf32>
    %18 = vector.shape_cast %17 : vector<1x1x32xf32> to vector<1x32xf32>
    %19 = arith.index_cast %arg1 : i32 to index
    %c0_15 = arith.constant 0 : index
    %c0_16 = arith.constant 0 : index
    %20 = vector.load %arg9[%19, %c0_15, %c0_16] : memref<2x32x32xf32, #tpu.memory_space<vmem>>, vector<1x32x32xf32>
    %21 = vector.shape_cast %20 : vector<1x32x32xf32> to vector<32x32xf32>
    %22 = arith.index_cast %arg1 : i32 to index
    %c0_17 = arith.constant 0 : index
    %c0_18 = arith.constant 0 : index
    %23 = vector.load %arg10[%22, %c0_17, %c0_18] : memref<2x1x32xf32, #tpu.memory_space<vmem>>, vector<1x1x32xf32>
    %24 = vector.shape_cast %23 : vector<1x1x32xf32> to vector<1x32xf32>
    %25 = arith.index_cast %arg1 : i32 to index
    %c0_19 = arith.constant 0 : index
    %c0_20 = arith.constant 0 : index
    %26 = vector.load %arg11[%25, %c0_19, %c0_20] : memref<2x32x32xf32, #tpu.memory_space<vmem>>, vector<1x32x32xf32>
    %27 = vector.shape_cast %26 : vector<1x32x32xf32> to vector<32x32xf32>
    %28 = arith.index_cast %arg1 : i32 to index
    %c0_21 = arith.constant 0 : index
    %c0_22 = arith.constant 0 : index
    %29 = vector.load %arg12[%28, %c0_21, %c0_22] : memref<2x1x32xf32, #tpu.memory_space<vmem>>, vector<1x1x32xf32>
    %30 = vector.shape_cast %29 : vector<1x1x32xf32> to vector<1x32xf32>
    %31 = arith.index_cast %arg1 : i32 to index
    %c0_23 = arith.constant 0 : index
    %c0_24 = arith.constant 0 : index
    %32 = vector.load %arg13[%31, %c0_23, %c0_24] : memref<2x32x32xf32, #tpu.memory_space<vmem>>, vector<1x32x32xf32>
    %33 = vector.shape_cast %32 : vector<1x32x32xf32> to vector<32x32xf32>
    %34 = arith.index_cast %arg1 : i32 to index
    %c0_25 = arith.constant 0 : index
    %c0_26 = arith.constant 0 : index
    %35 = vector.load %arg14[%34, %c0_25, %c0_26] : memref<2x1x32xf32, #tpu.memory_space<vmem>>, vector<1x1x32xf32>
    %36 = vector.shape_cast %35 : vector<1x1x32xf32> to vector<1x32xf32>
    %37 = arith.index_cast %arg1 : i32 to index
    %c0_27 = arith.constant 0 : index
    %c0_28 = arith.constant 0 : index
    %38 = vector.load %arg15[%37, %c0_27, %c0_28] : memref<2x32x32xf32, #tpu.memory_space<vmem>>, vector<1x32x32xf32>
    %39 = vector.shape_cast %38 : vector<1x32x32xf32> to vector<32x32xf32>
    %40 = arith.index_cast %arg1 : i32 to index
    %c0_29 = arith.constant 0 : index
    %c0_30 = arith.constant 0 : index
    %41 = vector.load %arg16[%40, %c0_29, %c0_30] : memref<2x1x32xf32, #tpu.memory_space<vmem>>, vector<1x1x32xf32>
    %42 = vector.shape_cast %41 : vector<1x1x32xf32> to vector<1x32xf32>
    %43 = arith.index_cast %arg1 : i32 to index
    %c0_31 = arith.constant 0 : index
    %c0_32 = arith.constant 0 : index
    %44 = vector.load %arg17[%43, %c0_31, %c0_32] : memref<2x1x32xf32, #tpu.memory_space<vmem>>, vector<1x1x32xf32>
    %45 = vector.shape_cast %44 : vector<1x1x32xf32> to vector<1x32xf32>
    %46 = arith.index_cast %arg1 : i32 to index
    %c0_33 = arith.constant 0 : index
    %c0_34 = arith.constant 0 : index
    %47 = vector.load %arg18[%46, %c0_33, %c0_34] : memref<2x1x32xf32, #tpu.memory_space<vmem>>, vector<1x1x32xf32>
    %48 = vector.shape_cast %47 : vector<1x1x32xf32> to vector<1x32xf32>
    %49 = arith.index_cast %arg1 : i32 to index
    %c0_35 = arith.constant 0 : index
    %c0_36 = arith.constant 0 : index
    %50 = vector.load %arg19[%49, %c0_35, %c0_36] : memref<2x32x64xf32, #tpu.memory_space<vmem>>, vector<1x32x64xf32>
    %51 = vector.shape_cast %50 : vector<1x32x64xf32> to vector<32x64xf32>
    %52 = arith.index_cast %arg1 : i32 to index
    %c0_37 = arith.constant 0 : index
    %c0_38 = arith.constant 0 : index
    %53 = vector.load %arg20[%52, %c0_37, %c0_38] : memref<2x1x64xf32, #tpu.memory_space<vmem>>, vector<1x1x64xf32>
    %54 = vector.shape_cast %53 : vector<1x1x64xf32> to vector<1x64xf32>
    %55 = arith.index_cast %arg1 : i32 to index
    %c0_39 = arith.constant 0 : index
    %c0_40 = arith.constant 0 : index
    %56 = vector.load %arg21[%55, %c0_39, %c0_40] : memref<2x64x32xf32, #tpu.memory_space<vmem>>, vector<1x64x32xf32>
    %57 = vector.shape_cast %56 : vector<1x64x32xf32> to vector<64x32xf32>
    %58 = arith.index_cast %arg1 : i32 to index
    %c0_41 = arith.constant 0 : index
    %c0_42 = arith.constant 0 : index
    %59 = vector.load %arg22[%58, %c0_41, %c0_42] : memref<2x1x32xf32, #tpu.memory_space<vmem>>, vector<1x1x32xf32>
    %60 = vector.shape_cast %59 : vector<1x1x32xf32> to vector<1x32xf32>
    %cst = arith.constant dense<0.000000e+00> : vector<8xf32>
    %61 = vector.multi_reduction <add>, %3, %cst [1] : vector<8x32xf32> to vector<8xf32>
    %62 = vector.shape_cast %61 : vector<8xf32> to vector<8x1xf32>
    %cst_43 = arith.constant 3.200000e+01 : f32
    %63 = vector.broadcast %cst_43 : f32 to vector<8x1xf32>
    %64 = arith.divf %62, %63 : vector<8x1xf32>
    %65 = vector.broadcast %64 : vector<8x1xf32> to vector<8x32xf32>
    %66 = arith.subf %3, %65 : vector<8x32xf32>
    %67 = arith.mulf %66, %66 : vector<8x32xf32>
    %cst_44 = arith.constant dense<0.000000e+00> : vector<8xf32>
    %68 = vector.multi_reduction <add>, %67, %cst_44 [1] : vector<8x32xf32> to vector<8xf32>
    %69 = vector.shape_cast %68 : vector<8xf32> to vector<8x1xf32>
    %cst_45 = arith.constant 3.200000e+01 : f32
    %70 = vector.broadcast %cst_45 : f32 to vector<8x1xf32>
    %71 = arith.divf %69, %70 : vector<8x1xf32>
    %72 = vector.broadcast %64 : vector<8x1xf32> to vector<8x32xf32>
    %73 = arith.subf %3, %72 : vector<8x32xf32>
    %cst_46 = arith.constant 9.99999974E-6 : f32
    %74 = vector.broadcast %cst_46 : f32 to vector<8x1xf32>
    %75 = arith.addf %71, %74 : vector<8x1xf32>
    %76 = math.rsqrt %75 : vector<8x1xf32>
    %77 = vector.broadcast %76 : vector<8x1xf32> to vector<8x32xf32>
    %78 = arith.mulf %73, %77 : vector<8x32xf32>
    %79 = vector.broadcast %9 : vector<1x32xf32> to vector<8x32xf32>
    %80 = arith.mulf %78, %79 : vector<8x32xf32>
    %81 = vector.broadcast %12 : vector<1x32xf32> to vector<8x32xf32>
    %82 = arith.addf %80, %81 : vector<8x32xf32>
    %cst_47 = arith.constant dense<0.000000e+00> : vector<8xf32>
    %83 = vector.multi_reduction <add>, %5, %cst_47 [1] : vector<8x32xf32> to vector<8xf32>
    %84 = vector.shape_cast %83 : vector<8xf32> to vector<8x1xf32>
    %cst_48 = arith.constant 3.200000e+01 : f32
    %85 = vector.broadcast %cst_48 : f32 to vector<8x1xf32>
    %86 = arith.divf %84, %85 : vector<8x1xf32>
    %87 = vector.broadcast %86 : vector<8x1xf32> to vector<8x32xf32>
    %88 = arith.subf %5, %87 : vector<8x32xf32>
    %89 = arith.mulf %88, %88 : vector<8x32xf32>
    %cst_49 = arith.constant dense<0.000000e+00> : vector<8xf32>
    %90 = vector.multi_reduction <add>, %89, %cst_49 [1] : vector<8x32xf32> to vector<8xf32>
    %91 = vector.shape_cast %90 : vector<8xf32> to vector<8x1xf32>
    %cst_50 = arith.constant 3.200000e+01 : f32
    %92 = vector.broadcast %cst_50 : f32 to vector<8x1xf32>
    %93 = arith.divf %91, %92 : vector<8x1xf32>
    %94 = vector.broadcast %86 : vector<8x1xf32> to vector<8x32xf32>
    %95 = arith.subf %5, %94 : vector<8x32xf32>
    %cst_51 = arith.constant 9.99999974E-6 : f32
    %96 = vector.broadcast %cst_51 : f32 to vector<8x1xf32>
    %97 = arith.addf %93, %96 : vector<8x1xf32>
    %98 = math.rsqrt %97 : vector<8x1xf32>
    %99 = vector.broadcast %98 : vector<8x1xf32> to vector<8x32xf32>
    %100 = arith.mulf %95, %99 : vector<8x32xf32>
    %101 = vector.broadcast %15 : vector<1x32xf32> to vector<8x32xf32>
    %102 = arith.mulf %100, %101 : vector<8x32xf32>
    %103 = vector.broadcast %18 : vector<1x32xf32> to vector<8x32xf32>
    %104 = arith.addf %102, %103 : vector<8x32xf32>
    %cst_52 = arith.constant dense<0.000000e+00> : vector<8x32xf32>
    %105 = tpu.matmul %82, %21, %cst_52 {dimension_numbers = #tpu.dot_dimension_numbers<[1], [0], [0], [1], [0, 0, 1, 1], [], []>} : vector<8x32xf32>, vector<32x32xf32>, vector<8x32xf32> -> vector<8x32xf32>
    %106 = vector.broadcast %24 : vector<1x32xf32> to vector<8x32xf32>
    %107 = arith.addf %105, %106 : vector<8x32xf32>
    %cst_53 = arith.constant dense<0.000000e+00> : vector<8x32xf32>
    %108 = tpu.matmul %104, %27, %cst_53 {dimension_numbers = #tpu.dot_dimension_numbers<[1], [0], [0], [1], [0, 0, 1, 1], [], []>} : vector<8x32xf32>, vector<32x32xf32>, vector<8x32xf32> -> vector<8x32xf32>
    %109 = vector.broadcast %30 : vector<1x32xf32> to vector<8x32xf32>
    %110 = arith.addf %108, %109 : vector<8x32xf32>
    %cst_54 = arith.constant dense<0.000000e+00> : vector<8x32xf32>
    %111 = tpu.matmul %104, %33, %cst_54 {dimension_numbers = #tpu.dot_dimension_numbers<[1], [0], [0], [1], [0, 0, 1, 1], [], []>} : vector<8x32xf32>, vector<32x32xf32>, vector<8x32xf32> -> vector<8x32xf32>
    %112 = vector.broadcast %36 : vector<1x32xf32> to vector<8x32xf32>
    %113 = arith.addf %111, %112 : vector<8x32xf32>
    %cst_55 = arith.constant dense<0xFF800000> : vector<8xf32>
    %114 = vector.multi_reduction <maximumf>, %107, %cst_55 [1] : vector<8x32xf32> to vector<8xf32>
    %115 = vector.shape_cast %114 : vector<8xf32> to vector<8x1xf32>
    %116 = vector.broadcast %115 : vector<8x1xf32> to vector<8x32xf32>
    %117 = arith.subf %107, %116 : vector<8x32xf32>
    %118 = math.exp %117 : vector<8x32xf32>
    %cst_56 = arith.constant dense<0.000000e+00> : vector<8x32xf32>
    %119 = tpu.matmul %118, %6, %cst_56 {dimension_numbers = #tpu.dot_dimension_numbers<[1], [0], [0], [1], [0, 0, 1, 1], [], []>} : vector<8x32xf32>, vector<32x32xf32>, vector<8x32xf32> -> vector<8x32xf32>
    %120 = arith.divf %118, %119 : vector<8x32xf32>
    %cst_57 = arith.constant dense<0xFF800000> : vector<8xf32>
    %121 = vector.multi_reduction <maximumf>, %110, %cst_57 [1] : vector<8x32xf32> to vector<8xf32>
    %122 = vector.shape_cast %121 : vector<8xf32> to vector<8x1xf32>
    %123 = vector.broadcast %122 : vector<8x1xf32> to vector<8x32xf32>
    %124 = arith.subf %110, %123 : vector<8x32xf32>
    %125 = math.exp %124 : vector<8x32xf32>
    %cst_58 = arith.constant dense<0.000000e+00> : vector<8x32xf32>
    %126 = tpu.matmul %125, %6, %cst_58 {dimension_numbers = #tpu.dot_dimension_numbers<[1], [0], [0], [1], [0, 0, 1, 1], [], []>} : vector<8x32xf32>, vector<32x32xf32>, vector<8x32xf32> -> vector<8x32xf32>
    %127 = arith.divf %125, %126 : vector<8x32xf32>
    %cst_59 = arith.constant dense<0.000000e+00> : vector<32x32xf32>
    %128 = tpu.matmul %127, %113, %cst_59 {dimension_numbers = #tpu.dot_dimension_numbers<[0], [0], [1], [1], [0, 1, 1, 1], [], []>} : vector<8x32xf32>, vector<8x32xf32>, vector<32x32xf32> -> vector<32x32xf32>
    %129 = arith.mulf %128, %6 : vector<32x32xf32>
    %cst_60 = arith.constant dense<0.000000e+00> : vector<8x32xf32>
    %130 = tpu.matmul %120, %129, %cst_60 {dimension_numbers = #tpu.dot_dimension_numbers<[1], [0], [0], [1], [0, 0, 1, 1], [], []>} : vector<8x32xf32>, vector<32x32xf32>, vector<8x32xf32> -> vector<8x32xf32>
    %cst_61 = arith.constant dense<0.000000e+00> : vector<8x32xf32>
    %131 = tpu.matmul %3, %39, %cst_61 {dimension_numbers = #tpu.dot_dimension_numbers<[1], [0], [0], [1], [0, 0, 1, 1], [], []>} : vector<8x32xf32>, vector<32x32xf32>, vector<8x32xf32> -> vector<8x32xf32>
    %132 = vector.broadcast %42 : vector<1x32xf32> to vector<8x32xf32>
    %133 = arith.addf %131, %132 : vector<8x32xf32>
    %134 = arith.addf %133, %130 : vector<8x32xf32>
    %cst_62 = arith.constant dense<0.000000e+00> : vector<8xf32>
    %135 = vector.multi_reduction <add>, %134, %cst_62 [1] : vector<8x32xf32> to vector<8xf32>
    %136 = vector.shape_cast %135 : vector<8xf32> to vector<8x1xf32>
    %cst_63 = arith.constant 3.200000e+01 : f32
    %137 = vector.broadcast %cst_63 : f32 to vector<8x1xf32>
    %138 = arith.divf %136, %137 : vector<8x1xf32>
    %139 = vector.broadcast %138 : vector<8x1xf32> to vector<8x32xf32>
    %140 = arith.subf %134, %139 : vector<8x32xf32>
    %141 = arith.mulf %140, %140 : vector<8x32xf32>
    %cst_64 = arith.constant dense<0.000000e+00> : vector<8xf32>
    %142 = vector.multi_reduction <add>, %141, %cst_64 [1] : vector<8x32xf32> to vector<8xf32>
    %143 = vector.shape_cast %142 : vector<8xf32> to vector<8x1xf32>
    %cst_65 = arith.constant 3.200000e+01 : f32
    %144 = vector.broadcast %cst_65 : f32 to vector<8x1xf32>
    %145 = arith.divf %143, %144 : vector<8x1xf32>
    %146 = vector.broadcast %138 : vector<8x1xf32> to vector<8x32xf32>
    %147 = arith.subf %134, %146 : vector<8x32xf32>
    %cst_66 = arith.constant 9.99999974E-6 : f32
    %148 = vector.broadcast %cst_66 : f32 to vector<8x1xf32>
    %149 = arith.addf %145, %148 : vector<8x1xf32>
    %150 = math.rsqrt %149 : vector<8x1xf32>
    %151 = vector.broadcast %150 : vector<8x1xf32> to vector<8x32xf32>
    %152 = arith.mulf %147, %151 : vector<8x32xf32>
    %153 = vector.broadcast %45 : vector<1x32xf32> to vector<8x32xf32>
    %154 = arith.mulf %152, %153 : vector<8x32xf32>
    %155 = vector.broadcast %48 : vector<1x32xf32> to vector<8x32xf32>
    %156 = arith.addf %154, %155 : vector<8x32xf32>
    %cst_67 = arith.constant dense<0.000000e+00> : vector<8x64xf32>
    %157 = tpu.matmul %156, %51, %cst_67 {dimension_numbers = #tpu.dot_dimension_numbers<[1], [0], [0], [1], [0, 0, 1, 1], [], []>} : vector<8x32xf32>, vector<32x64xf32>, vector<8x64xf32> -> vector<8x64xf32>
    %158 = vector.broadcast %54 : vector<1x64xf32> to vector<8x64xf32>
    %159 = arith.addf %157, %158 : vector<8x64xf32>
    %cst_68 = arith.constant 5.000000e-01 : f32
    %160 = vector.broadcast %cst_68 : f32 to vector<8x64xf32>
    %161 = arith.mulf %159, %160 : vector<8x64xf32>
    %cst_69 = arith.constant 0.707106769 : f32
    %162 = vector.broadcast %cst_69 : f32 to vector<8x64xf32>
    %163 = arith.mulf %159, %162 : vector<8x64xf32>
    %cst_70 = arith.constant 0.000000e+00 : f32
    %164 = vector.broadcast %cst_70 : f32 to vector<8x64xf32>
    %165 = arith.cmpf oge, %163, %164 : vector<8x64xf32>
    %cst_71 = arith.constant 1.000000e+00 : f32
    %cst_72 = arith.constant -1.000000e+00 : f32
    %166 = vector.broadcast %cst_71 : f32 to vector<8x64xf32>
    %167 = vector.broadcast %cst_72 : f32 to vector<8x64xf32>
    %168 = arith.select %165, %166, %167 : vector<8x64xi1>, vector<8x64xf32>
    %169 = math.absf %163 : vector<8x64xf32>
    %cst_73 = arith.constant 0.327591091 : f32
    %170 = vector.broadcast %cst_73 : f32 to vector<8x64xf32>
    %171 = arith.mulf %170, %169 : vector<8x64xf32>
    %cst_74 = arith.constant 1.000000e+00 : f32
    %172 = vector.broadcast %cst_74 : f32 to vector<8x64xf32>
    %173 = arith.addf %172, %171 : vector<8x64xf32>
    %cst_75 = arith.constant 1.000000e+00 : f32
    %174 = vector.broadcast %cst_75 : f32 to vector<8x64xf32>
    %175 = arith.divf %174, %173 : vector<8x64xf32>
    %cst_76 = arith.constant 1.06140542 : f32
    %176 = vector.broadcast %cst_76 : f32 to vector<8x64xf32>
    %177 = arith.mulf %176, %175 : vector<8x64xf32>
    %cst_77 = arith.constant -1.45315206 : f32
    %178 = vector.broadcast %cst_77 : f32 to vector<8x64xf32>
    %179 = arith.addf %177, %178 : vector<8x64xf32>
    %180 = arith.mulf %179, %175 : vector<8x64xf32>
    %cst_78 = arith.constant 1.42141378 : f32
    %181 = vector.broadcast %cst_78 : f32 to vector<8x64xf32>
    %182 = arith.addf %180, %181 : vector<8x64xf32>
    %183 = arith.mulf %182, %175 : vector<8x64xf32>
    %cst_79 = arith.constant -0.284496725 : f32
    %184 = vector.broadcast %cst_79 : f32 to vector<8x64xf32>
    %185 = arith.addf %183, %184 : vector<8x64xf32>
    %186 = arith.mulf %185, %175 : vector<8x64xf32>
    %cst_80 = arith.constant 0.254829586 : f32
    %187 = vector.broadcast %cst_80 : f32 to vector<8x64xf32>
    %188 = arith.addf %186, %187 : vector<8x64xf32>
    %189 = arith.mulf %188, %175 : vector<8x64xf32>
    %cst_81 = arith.constant 0.000000e+00 : f32
    %190 = vector.broadcast %cst_81 : f32 to vector<8x64xf32>
    %191 = arith.subf %190, %169 : vector<8x64xf32>
    %192 = arith.mulf %191, %169 : vector<8x64xf32>
    %193 = math.exp %192 : vector<8x64xf32>
    %194 = arith.mulf %189, %193 : vector<8x64xf32>
    %cst_82 = arith.constant 1.000000e+00 : f32
    %195 = vector.broadcast %cst_82 : f32 to vector<8x64xf32>
    %196 = arith.subf %195, %194 : vector<8x64xf32>
    %197 = arith.mulf %168, %196 : vector<8x64xf32>
    %cst_83 = arith.constant 1.000000e+00 : f32
    %198 = vector.broadcast %cst_83 : f32 to vector<8x64xf32>
    %199 = arith.addf %198, %197 : vector<8x64xf32>
    %200 = arith.mulf %161, %199 : vector<8x64xf32>
    %cst_84 = arith.constant dense<0.000000e+00> : vector<8x32xf32>
    %201 = tpu.matmul %200, %57, %cst_84 {dimension_numbers = #tpu.dot_dimension_numbers<[1], [0], [0], [1], [0, 0, 1, 1], [], []>} : vector<8x64xf32>, vector<64x32xf32>, vector<8x32xf32> -> vector<8x32xf32>
    %202 = vector.broadcast %60 : vector<1x32xf32> to vector<8x32xf32>
    %203 = arith.addf %201, %202 : vector<8x32xf32>
    %204 = arith.addf %134, %203 : vector<8x32xf32>
    %c0_85 = arith.constant 0 : index
    %c0_86 = arith.constant 0 : index
    %205 = vector.load %arg24[%c0_85, %c0_86] : memref<8x32xf32, #tpu.memory_space<vmem>>, vector<8x32xf32>
    tpu.vector_store %arg24[%c0_85, %c0_86], %204 {strides = array<i32>} : memref<8x32xf32, #tpu.memory_space<vmem>>, vector<8x32xf32>,
    %c0_87 = arith.constant 0 : index
    %c0_88 = arith.constant 0 : index
    %c0_89 = arith.constant 0 : index
    %206 = vector.load %arg23[%c0_87, %c0_88, %c0_89] : memref<1x8x32xf32, #tpu.memory_space<vmem>>, vector<1x8x32xf32>
    %207 = vector.shape_cast %206 : vector<1x8x32xf32> to vector<8x32xf32>
    %208 = vector.shape_cast %204 : vector<8x32xf32> to vector<1x8x32xf32>
    tpu.vector_store %arg23[%c0_87, %c0_88, %c0_89], %208 {strides = array<i32>} : memref<1x8x32xf32, #tpu.memory_space<vmem>>, vector<1x8x32xf32>,
    return
  }
  func.func @transform_0(%arg0: i32, %arg1: i32) -> (i32, i32, i32) {
    %c0_i32 = arith.constant 0 : i32
    %c0_i32_0 = arith.constant 0 : i32
    %c0_i32_1 = arith.constant 0 : i32
    return %arg0, %c0_i32, %c0_i32_0 : i32, i32, i32
  }
  func.func @transform_1(%arg0: i32, %arg1: i32) -> (i32, i32, i32) {
    %c0_i32 = arith.constant 0 : i32
    %c0_i32_0 = arith.constant 0 : i32
    %c0_i32_1 = arith.constant 0 : i32
    return %arg0, %c0_i32, %c0_i32_0 : i32, i32, i32
  }
  func.func @transform_2(%arg0: i32, %arg1: i32) -> (i32, i32) {
    %c0_i32 = arith.constant 0 : i32
    %c0_i32_0 = arith.constant 0 : i32
    %c0_i32_1 = arith.constant 0 : i32
    return %c0_i32, %c0_i32_0 : i32, i32
  }
  func.func @transform_3(%arg0: i32, %arg1: i32) -> (i32, i32, i32) {
    %c0_i32 = arith.constant 0 : i32
    %c0_i32_0 = arith.constant 0 : i32
    %c0_i32_1 = arith.constant 0 : i32
    %c0_i32_2 = arith.constant 0 : i32
    return %c0_i32, %c0_i32_0, %c0_i32_1 : i32, i32, i32
  }
  func.func @transform_4(%arg0: i32, %arg1: i32) -> (i32, i32, i32) {
    %c0_i32 = arith.constant 0 : i32
    %c0_i32_0 = arith.constant 0 : i32
    %c0_i32_1 = arith.constant 0 : i32
    %c0_i32_2 = arith.constant 0 : i32
    return %c0_i32, %c0_i32_0, %c0_i32_1 : i32, i32, i32
  }
  func.func @transform_5(%arg0: i32, %arg1: i32) -> (i32, i32, i32) {
    %c0_i32 = arith.constant 0 : i32
    %c0_i32_0 = arith.constant 0 : i32
    %c0_i32_1 = arith.constant 0 : i32
    %c0_i32_2 = arith.constant 0 : i32
    return %c0_i32, %c0_i32_0, %c0_i32_1 : i32, i32, i32
  }
  func.func @transform_6(%arg0: i32, %arg1: i32) -> (i32, i32, i32) {
    %c0_i32 = arith.constant 0 : i32
    %c0_i32_0 = arith.constant 0 : i32
    %c0_i32_1 = arith.constant 0 : i32
    %c0_i32_2 = arith.constant 0 : i32
    return %c0_i32, %c0_i32_0, %c0_i32_1 : i32, i32, i32
  }
  func.func @transform_7(%arg0: i32, %arg1: i32) -> (i32, i32, i32) {
    %c0_i32 = arith.constant 0 : i32
    %c0_i32_0 = arith.constant 0 : i32
    %c0_i32_1 = arith.constant 0 : i32
    %c0_i32_2 = arith.constant 0 : i32
    return %c0_i32, %c0_i32_0, %c0_i32_1 : i32, i32, i32
  }
  func.func @transform_8(%arg0: i32, %arg1: i32) -> (i32, i32, i32) {
    %c0_i32 = arith.constant 0 : i32
    %c0_i32_0 = arith.constant 0 : i32
    %c0_i32_1 = arith.constant 0 : i32
    %c0_i32_2 = arith.constant 0 : i32
    return %c0_i32, %c0_i32_0, %c0_i32_1 : i32, i32, i32
  }
  func.func @transform_9(%arg0: i32, %arg1: i32) -> (i32, i32, i32) {
    %c0_i32 = arith.constant 0 : i32
    %c0_i32_0 = arith.constant 0 : i32
    %c0_i32_1 = arith.constant 0 : i32
    %c0_i32_2 = arith.constant 0 : i32
    return %c0_i32, %c0_i32_0, %c0_i32_1 : i32, i32, i32
  }
  func.func @transform_10(%arg0: i32, %arg1: i32) -> (i32, i32, i32) {
    %c0_i32 = arith.constant 0 : i32
    %c0_i32_0 = arith.constant 0 : i32
    %c0_i32_1 = arith.constant 0 : i32
    %c0_i32_2 = arith.constant 0 : i32
    return %c0_i32, %c0_i32_0, %c0_i32_1 : i32, i32, i32
  }
  func.func @transform_11(%arg0: i32, %arg1: i32) -> (i32, i32, i32) {
    %c0_i32 = arith.constant 0 : i32
    %c0_i32_0 = arith.constant 0 : i32
    %c0_i32_1 = arith.constant 0 : i32
    %c0_i32_2 = arith.constant 0 : i32
    return %c0_i32, %c0_i32_0, %c0_i32_1 : i32, i32, i32
  }
  func.func @transform_12(%arg0: i32, %arg1: i32) -> (i32, i32, i32) {
    %c0_i32 = arith.constant 0 : i32
    %c0_i32_0 = arith.constant 0 : i32
    %c0_i32_1 = arith.constant 0 : i32
    %c0_i32_2 = arith.constant 0 : i32
    return %c0_i32, %c0_i32_0, %c0_i32_1 : i32, i32, i32
  }
  func.func @transform_13(%arg0: i32, %arg1: i32) -> (i32, i32, i32) {
    %c0_i32 = arith.constant 0 : i32
    %c0_i32_0 = arith.constant 0 : i32
    %c0_i32_1 = arith.constant 0 : i32
    %c0_i32_2 = arith.constant 0 : i32
    return %c0_i32, %c0_i32_0, %c0_i32_1 : i32, i32, i32
  }
  func.func @transform_14(%arg0: i32, %arg1: i32) -> (i32, i32, i32) {
    %c0_i32 = arith.constant 0 : i32
    %c0_i32_0 = arith.constant 0 : i32
    %c0_i32_1 = arith.constant 0 : i32
    %c0_i32_2 = arith.constant 0 : i32
    return %c0_i32, %c0_i32_0, %c0_i32_1 : i32, i32, i32
  }
  func.func @transform_15(%arg0: i32, %arg1: i32) -> (i32, i32, i32) {
    %c0_i32 = arith.constant 0 : i32
    %c0_i32_0 = arith.constant 0 : i32
    %c0_i32_1 = arith.constant 0 : i32
    %c0_i32_2 = arith.constant 0 : i32
    return %c0_i32, %c0_i32_0, %c0_i32_1 : i32, i32, i32
  }
  func.func @transform_16(%arg0: i32, %arg1: i32) -> (i32, i32, i32) {
    %c0_i32 = arith.constant 0 : i32
    %c0_i32_0 = arith.constant 0 : i32
    %c0_i32_1 = arith.constant 0 : i32
    %c0_i32_2 = arith.constant 0 : i32
    return %c0_i32, %c0_i32_0, %c0_i32_1 : i32, i32, i32
  }
  func.func @transform_17(%arg0: i32, %arg1: i32) -> (i32, i32, i32) {
    %c0_i32 = arith.constant 0 : i32
    %c0_i32_0 = arith.constant 0 : i32
    %c0_i32_1 = arith.constant 0 : i32
    %c0_i32_2 = arith.constant 0 : i32
    return %c0_i32, %c0_i32_0, %c0_i32_1 : i32, i32, i32
  }
  func.func @transform_18(%arg0: i32, %arg1: i32) -> (i32, i32, i32) {
    %c0_i32 = arith.constant 0 : i32
    %c0_i32_0 = arith.constant 0 : i32
    %c0_i32_1 = arith.constant 0 : i32
    %c0_i32_2 = arith.constant 0 : i32
    return %c0_i32, %c0_i32_0, %c0_i32_1 : i32, i32, i32
  }
  func.func @transform_19(%arg0: i32, %arg1: i32) -> (i32, i32, i32) {
    %c0_i32 = arith.constant 0 : i32
    %c0_i32_0 = arith.constant 0 : i32
    %c0_i32_1 = arith.constant 0 : i32
    %c0_i32_2 = arith.constant 0 : i32
    return %c0_i32, %c0_i32_0, %c0_i32_1 : i32, i32, i32
  }
  func.func @transform_20(%arg0: i32, %arg1: i32) -> (i32, i32, i32) {
    %c0_i32 = arith.constant 0 : i32
    %c0_i32_0 = arith.constant 0 : i32
    %c0_i32_1 = arith.constant 0 : i32
    %c0_i32_2 = arith.constant 0 : i32
    return %c0_i32, %c0_i32_0, %c0_i32_1 : i32, i32, i32
  }
  func.func @transform_21(%arg0: i32, %arg1: i32) -> (i32, i32, i32) {
    %c0_i32 = arith.constant 0 : i32
    %c0_i32_0 = arith.constant 0 : i32
    %c0_i32_1 = arith.constant 0 : i32
    return %arg0, %c0_i32, %c0_i32_0 : i32, i32, i32
  }
}

</mosaic_0001>

<llo_original>
// kernel: tpu_custom_call.1
$region0: #{tpu_custom_call.1}
  #allocation0 [shape = 'u32[]', space=smem, size = 0x4, offset = 0x4, fixed_abs, tag = 'smem constant byte address 0x4 - core index']
  #allocation1 [shape = 'u32[144,128]{1,0:T(1,128)}', space=vmem, size = 0x12000, scoped, tag = 'internal scratch']
  #allocation2 [shape = 'f32[8,32]{1,0:T(8,128)}', space=vmem, size = 0x1000, scoped, tag = 'scratch operand']
  %s0 = inlined_call_operand.hbm [shape: f32[2,8,32], index: 0, kind: input, shape index: {}]
  %s1 = inlined_call_operand.hbm [shape: f32[2,8,32], index: 1, kind: input, shape index: {}]
  %s2 = inlined_call_operand.hbm [shape: f32[32,32], index: 2, kind: input, shape index: {}]
  %s3 = inlined_call_operand.vmem [shape: f32[2,1,32], index: 3, kind: input, shape index: {}]
  %s4 = inlined_call_operand.vmem [shape: f32[2,1,32], index: 4, kind: input, shape index: {}]
  %s5 = inlined_call_operand.vmem [shape: f32[2,1,32], index: 5, kind: input, shape index: {}]
  %s6 = inlined_call_operand.hbm [shape: f32[2,1,32], index: 6, kind: input, shape index: {}]
  %s7 = inlined_call_operand.vmem [shape: f32[2,32,32], index: 7, kind: input, shape index: {}]
  %s8 = inlined_call_operand.hbm [shape: f32[2,1,32], index: 8, kind: input, shape index: {}]
  %s9 = inlined_call_operand.vmem [shape: f32[2,32,32], index: 9, kind: input, shape index: {}]
  %s10 = inlined_call_operand.hbm [shape: f32[2,1,32], index: 10, kind: input, shape index: {}]
  %s11 = inlined_call_operand.vmem [shape: f32[2,32,32], index: 11, kind: input, shape index: {}]
  %s12 = inlined_call_operand.hbm [shape: f32[2,1,32], index: 12, kind: input, shape index: {}]
  %s13 = inlined_call_operand.hbm [shape: f32[2,32,32], index: 13, kind: input, shape index: {}]
  %s14 = inlined_call_operand.hbm [shape: f32[2,1,32], index: 14, kind: input, shape index: {}]
  %s15 = inlined_call_operand.hbm [shape: f32[2,1,32], index: 15, kind: input, shape index: {}]
  %s16 = inlined_call_operand.hbm [shape: f32[2,1,32], index: 16, kind: input, shape index: {}]
  %s17 = inlined_call_operand.hbm [shape: f32[2,32,64], index: 17, kind: input, shape index: {}]
  %s18 = inlined_call_operand.hbm [shape: f32[2,1,64], index: 18, kind: input, shape index: {}]
  %s19 = inlined_call_operand.vmem [shape: f32[2,64,32], index: 19, kind: input, shape index: {}]
  %s20 = inlined_call_operand.vmem [shape: f32[2,1,32], index: 20, kind: input, shape index: {}]
  %s21 = inlined_call_operand.hbm [shape: f32[2,8,32], index: 21, kind: output, shape index: {}]
  %s22 = sld [smem:[#allocation0]]
  $region173: #{tpu_custom_call.1} parent=0
    _
  %s24 = ssub.s32 1, %s22
  %s25 = scalar_select 0, %s24, %s22
  $region1: #{tpu_custom_call.1} parent=0
    #allocation3 [shape = 'u8[8192]{0}', space=vmem, size = 0x2000, scoped, tag = 'input window, operand 0']
    #allocation4 [shape = 's32[2]{0}', space=sflag, size = 0x8, scoped, tag = 'scoped memory for tpu_custom_call.1']
    #allocation5 [shape = 's32[2]{0}', space=sflag, size = 0x8, scoped, tag = 'scoped memory for tpu_custom_call.1']
    #allocation6 [shape = 'u8[8192]{0}', space=vmem, size = 0x2000, scoped, tag = 'input window, operand 1']
    #allocation7 [shape = 's32[2]{0}', space=sflag, size = 0x8, scoped, tag = 'scoped memory for tpu_custom_call.1']
    #allocation8 [shape = 'u8[16384]{0}', space=vmem, size = 0x4000, scoped, tag = 'input window, operand 2, single buffered']
    #allocation9 [shape = 'u8[1024]{0}', space=vmem, size = 0x400, scoped, tag = 'input window, operand 6, single buffered']
    #allocation10 [shape = 's32[1]{0}', space=sflag, size = 0x4, scoped, tag = 'scoped memory for tpu_custom_call.1']
    #allocation11 [shape = 'u8[1024]{0}', space=vmem, size = 0x400, scoped, tag = 'input window, operand 8, single buffered']
    #allocation12 [shape = 'u8[1024]{0}', space=vmem, size = 0x400, scoped, tag = 'input window, operand 10, single buffered']
    #allocation13 [shape = 's32[1]{0}', space=sflag, size = 0x4, scoped, tag = 'scoped memory for tpu_custom_call.1']
    #allocation14 [shape = 'u8[1024]{0}', space=vmem, size = 0x400, scoped, tag = 'input window, operand 12, single buffered']
    #allocation15 [shape = 'u8[32768]{0}', space=vmem, size = 0x8000, scoped, tag = 'input window, operand 13, single buffered']
    #allocation16 [shape = 's32[1]{0}', space=sflag, size = 0x4, scoped, tag = 'scoped memory for tpu_custom_call.1']
    #allocation17 [shape = 'u8[1024]{0}', space=vmem, size = 0x400, scoped, tag = 'input window, operand 14, single buffered']
    #allocation18 [shape = 'u8[1024]{0}', space=vmem, size = 0x400, scoped, tag = 'input window, operand 15, single buffered']
    #allocation19 [shape = 's32[1]{0}', space=sflag, size = 0x4, scoped, tag = 'scoped memory for tpu_custom_call.1']
    #allocation20 [shape = 'u8[1024]{0}', space=vmem, size = 0x400, scoped, tag = 'input window, operand 16, single buffered']
    #allocation21 [shape = 'u8[32768]{0}', space=vmem, size = 0x8000, scoped, tag = 'input window, operand 17, single buffered']
    #allocation22 [shape = 's32[1]{0}', space=sflag, size = 0x4, scoped, tag = 'scoped memory for tpu_custom_call.1']
    #allocation23 [shape = 'u8[1024]{0}', space=vmem, size = 0x400, scoped, tag = 'input window, operand 18, single buffered']
    #allocation24 [shape = 'u8[8192]{0}', space=vmem, size = 0x2000, scoped, tag = 'output window, operand 0']
    %26 = vsyncpa [#allocation4], 0
    %s27 = scalar_lea.sflag [#allocation4], 1
    %28 = vsyncpa %s27, 0
    %29 = vsyncpa [#allocation7], 0
    %s30 = scalar_lea.sflag [#allocation7], 1
    %31 = vsyncpa %s30, 0
    %32 = vsyncpa [#allocation10], 0
    %33 = vsyncpa [#allocation13], 0
    %34 = vsyncpa [#allocation16], 0
    %35 = vsyncpa [#allocation19], 0
    %36 = vsyncpa [#allocation22], 0
    %37 = vsyncpa [#allocation5], 0
    %s38 = scalar_lea.sflag [#allocation5], 1
    %39 = vsyncpa %s38, 0
    loop: start=0, step=1, limit=6
    $region2: #{tpu_custom_call.1} parent=1 // loop_pre_header
      _
    $region3: #{tpu_custom_call.1} parent=1 // loop_header
      %s41 = sphi 0, %s45
      %p42 = scmp.ge.s32.totalorder %s41, 6
      %s48 = sphi 0, %s60
      %s49 = sphi 0, %s56
      %s50 = sphi 0, %s48
      %s51 = sphi 0, %s49
      %s52 = sphi 0, %s50
      %s53 = sphi 0, %s51
      %s63 = sphi 0, %s65
      %s66 = sphi 0, %s63
      %s67 = sphi 0, %s66
      %s83 = sphi 0, %s67
      %s89 = sphi 0, %s91
      %s92 = sphi 0, %s89
      %s93 = sphi 0, %s92
      %s109 = sphi 0, %s93
      %s113 = sphi 0, %s113
      %s115 = sphi 0, %s113
      %s116 = sphi 0, %s115
      %s130 = sphi 0, %s116
      %s134 = sphi 0, %s134
      %s136 = sphi 0, %s134
      %s137 = sphi 0, %s136
      %s151 = sphi 0, %s137
      %s155 = sphi 0, %s155
      %s157 = sphi 0, %s155
      %s158 = sphi 0, %s157
      %s172 = sphi 0, %s158
      %s176 = sphi 0, %s176
      %s178 = sphi 0, %s176
      %s179 = sphi 0, %s178
      %s193 = sphi 0, %s179
      %s197 = sphi 0, %s197
      %s199 = sphi 0, %s197
      %s200 = sphi 0, %s199
      %s214 = sphi 0, %s200
      %s218 = sphi 0, %s218
      %s220 = sphi 0, %s218
      %s221 = sphi 0, %s220
      %s235 = sphi 0, %s221
      %s239 = sphi 0, %s239
      %s241 = sphi 0, %s239
      %s242 = sphi 0, %s241
      %s256 = sphi 0, %s242
      %s260 = sphi 0, %s260
      %s262 = sphi 0, %s260
      %s263 = sphi 0, %s262
      %s277 = sphi 0, %s263
      %s281 = sphi 0, %s281
      %s283 = sphi 0, %s281
      %s284 = sphi 0, %s283
      %s298 = sphi 0, %s284
      %s302 = sphi 0, %s302
      %s304 = sphi 0, %s302
      %s305 = sphi 0, %s304
      %s319 = sphi 0, %s305
      %s323 = sphi 0, %s323
      %s325 = sphi 0, %s323
      %s326 = sphi 0, %s325
      %s340 = sphi 0, %s326
      %s344 = sphi 0, %s344
      %s346 = sphi 0, %s344
      %s347 = sphi 0, %s346
      %s361 = sphi 0, %s347
      %s365 = sphi 0, %s365
      %s367 = sphi 0, %s365
      %s368 = sphi 0, %s367
      %s382 = sphi 0, %s368
      %s386 = sphi 0, %s386
      %s388 = sphi 0, %s386
      %s389 = sphi 0, %s388
      %s403 = sphi 0, %s389
      %s407 = sphi 0, %s407
      %s409 = sphi 0, %s407
      %s410 = sphi 0, %s409
      %s424 = sphi 0, %s410
      %s428 = sphi 0, %s428
      %s430 = sphi 0, %s428
      %s431 = sphi 0, %s430
      %s445 = sphi 0, %s431
      %s449 = sphi 0, %s449
      %s451 = sphi 0, %s449
      %s452 = sphi 0, %s451
      %s466 = sphi 0, %s452
      %s470 = sphi 0, %s470
      %s472 = sphi 0, %s470
      %s473 = sphi 0, %s472
      %s487 = sphi 0, %s473
      %s491 = sphi 0, %s491
      %s493 = sphi 0, %s491
      %s494 = sphi 0, %s493
      %s508 = sphi 0, %s494
      %s514 = sphi 0, %s516
      %s517 = sphi 0, %s514
      %s518 = sphi 0, %s517
      %s534 = sphi 0, %s518
    $region4: #{tpu_custom_call.1} parent=1 // loop_header_branch
      %44 = sbr.rel (%p42) target = $region8
    $region5: #{tpu_custom_call.1} parent=1 // loop_body
      %s46 = ssub.s32 %s41, 1
      %s47 = ssub.s32 %s41, 2
      %s54 = sadd.s32 1, %s49
      %p55 = scmp.ge.s32.totalorder %s54, 2
      %s56 = scalar_select %p55, 0, %s54
      %s57 = sadd.s32 1, %s48
      %s58 = scalar_select %p55, %s57, %s48
      %p59 = scmp.ge.s32.totalorder %s58, 2
      %s60 = scalar_select %p59, 0, %s58
      %s61 = ssub.s32 %s48, %s60
      %p62 = scmp.eq.s32.totalorder %s61, 0
      %s64 = sadd.s32 %s63, 1
      %s65 = scalar_select %p62, %s63, %s64
      %p68 = pneg %p62
      %p69 = scmp.eq.s32.totalorder %s41, 3
      %p70 = por %p68, %p69
      %p71 = scmp.ne.s32.totalorder %s63, %s66
      %p72 = scmp.eq.s32.totalorder %s41, 0
      %p73 = por %p71, %p72
      %p74 = scmp.ne.s32.totalorder %s63, %s66
      %p75 = scmp.eq.s32.totalorder %s46, 3
      %p76 = por %p74, %p75
      %p77 = scmp.ne.s32.totalorder %s66, %s67
      %p78 = scmp.eq.s32.totalorder %s46, 0
      %p79 = por %p77, %p78
      %p80 = scmp.ne.s32.totalorder %s66, %s67
      %p81 = scmp.eq.s32.totalorder %s47, 3
      %p82 = por %p80, %p81
      %p84 = scmp.ne.s32.totalorder %s67, %s83
      %p85 = scmp.eq.s32.totalorder %s47, 0
      %p86 = por %p84, %p85
      %s87 = ssub.s32 %s48, %s60
      %p88 = scmp.eq.s32.totalorder %s87, 0
      %s90 = sadd.s32 %s89, 1
      %s91 = scalar_select %p88, %s89, %s90
      %p94 = pneg %p88
      %p95 = scmp.eq.s32.totalorder %s41, 3
      %p96 = por %p94, %p95
      %p97 = scmp.ne.s32.totalorder %s89, %s92
      %p98 = scmp.eq.s32.totalorder %s41, 0
      %p99 = por %p97, %p98
      %p100 = scmp.ne.s32.totalorder %s89, %s92
      %p101 = scmp.eq.s32.totalorder %s46, 3
      %p102 = por %p100, %p101
      %p103 = scmp.ne.s32.totalorder %s92, %s93
      %p104 = scmp.eq.s32.totalorder %s46, 0
      %p105 = por %p103, %p104
      %p106 = scmp.ne.s32.totalorder %s92, %s93
      %p107 = scmp.eq.s32.totalorder %s47, 3
      %p108 = por %p106, %p107
      %p110 = scmp.ne.s32.totalorder %s93, %s109
      %p111 = scmp.eq.s32.totalorder %s47, 0
      %p112 = por %p110, %p111
      %s114 = sadd.s32 %s113, 1
      %p117 = scmp.eq.s32.totalorder %s41, 3
      %p118 = scmp.ne.s32.totalorder %s113, %s115
      %p119 = scmp.eq.s32.totalorder %s41, 0
      %p120 = por %p118, %p119
      %p121 = scmp.ne.s32.totalorder %s113, %s115
      %p122 = scmp.eq.s32.totalorder %s46, 3
      %p123 = por %p121, %p122
      %p124 = scmp.ne.s32.totalorder %s115, %s116
      %p125 = scmp.eq.s32.totalorder %s46, 0
      %p126 = por %p124, %p125
      %p127 = scmp.ne.s32.totalorder %s115, %s116
      %p128 = scmp.eq.s32.totalorder %s47, 3
      %p129 = por %p127, %p128
      %p131 = scmp.ne.s32.totalorder %s116, %s130
      %p132 = scmp.eq.s32.totalorder %s47, 0
      %p133 = por %p131, %p132
      %s135 = sadd.s32 %s134, 1
      %p138 = scmp.eq.s32.totalorder %s41, 3
      %p139 = scmp.ne.s32.totalorder %s134, %s136
      %p140 = scmp.eq.s32.totalorder %s41, 0
      %p141 = por %p139, %p140
      %p142 = scmp.ne.s32.totalorder %s134, %s136
      %p143 = scmp.eq.s32.totalorder %s46, 3
      %p144 = por %p142, %p143
      %p145 = scmp.ne.s32.totalorder %s136, %s137
      %p146 = scmp.eq.s32.totalorder %s46, 0
      %p147 = por %p145, %p146
      %p148 = scmp.ne.s32.totalorder %s136, %s137
      %p149 = scmp.eq.s32.totalorder %s47, 3
      %p150 = por %p148, %p149
      %p152 = scmp.ne.s32.totalorder %s137, %s151
      %p153 = scmp.eq.s32.totalorder %s47, 0
      %p154 = por %p152, %p153
      %s156 = sadd.s32 %s155, 1
      %p159 = scmp.eq.s32.totalorder %s41, 3
      %p160 = scmp.ne.s32.totalorder %s155, %s157
      %p161 = scmp.eq.s32.totalorder %s41, 0
      %p162 = por %p160, %p161
      %p163 = scmp.ne.s32.totalorder %s155, %s157
      %p164 = scmp.eq.s32.totalorder %s46, 3
      %p165 = por %p163, %p164
      %p166 = scmp.ne.s32.totalorder %s157, %s158
      %p167 = scmp.eq.s32.totalorder %s46, 0
      %p168 = por %p166, %p167
      %p169 = scmp.ne.s32.totalorder %s157, %s158
      %p170 = scmp.eq.s32.totalorder %s47, 3
      %p171 = por %p169, %p170
      %p173 = scmp.ne.s32.totalorder %s158, %s172
      %p174 = scmp.eq.s32.totalorder %s47, 0
      %p175 = por %p173, %p174
      %s177 = sadd.s32 %s176, 1
      %p180 = scmp.eq.s32.totalorder %s41, 3
      %p181 = scmp.ne.s32.totalorder %s176, %s178
      %p182 = scmp.eq.s32.totalorder %s41, 0
      %p183 = por %p181, %p182
      %p184 = scmp.ne.s32.totalorder %s176, %s178
      %p185 = scmp.eq.s32.totalorder %s46, 3
      %p186 = por %p184, %p185
      %p187 = scmp.ne.s32.totalorder %s178, %s179
      %p188 = scmp.eq.s32.totalorder %s46, 0
      %p189 = por %p187, %p188
      %p190 = scmp.ne.s32.totalorder %s178, %s179
      %p191 = scmp.eq.s32.totalorder %s47, 3
      %p192 = por %p190, %p191
      %p194 = scmp.ne.s32.totalorder %s179, %s193
      %p195 = scmp.eq.s32.totalorder %s47, 0
      %p196 = por %p194, %p195
      %s198 = sadd.s32 %s197, 1
      %p201 = scmp.eq.s32.totalorder %s41, 3
      %p202 = scmp.ne.s32.totalorder %s197, %s199
      %p203 = scmp.eq.s32.totalorder %s41, 0
      %p204 = por %p202, %p203
      %p205 = scmp.ne.s32.totalorder %s197, %s199
      %p206 = scmp.eq.s32.totalorder %s46, 3
      %p207 = por %p205, %p206
      %p208 = scmp.ne.s32.totalorder %s199, %s200
      %p209 = scmp.eq.s32.totalorder %s46, 0
      %p210 = por %p208, %p209
      %p211 = scmp.ne.s32.totalorder %s199, %s200
      %p212 = scmp.eq.s32.totalorder %s47, 3
      %p213 = por %p211, %p212
      %p215 = scmp.ne.s32.totalorder %s200, %s214
      %p216 = scmp.eq.s32.totalorder %s47, 0
      %p217 = por %p215, %p216
      %s219 = sadd.s32 %s218, 1
      %p222 = scmp.eq.s32.totalorder %s41, 3
      %p223 = scmp.ne.s32.totalorder %s218, %s220
      %p224 = scmp.eq.s32.totalorder %s41, 0
      %p225 = por %p223, %p224
      %p226 = scmp.ne.s32.totalorder %s218, %s220
      %p227 = scmp.eq.s32.totalorder %s46, 3
      %p228 = por %p226, %p227
      %p229 = scmp.ne.s32.totalorder %s220, %s221
      %p230 = scmp.eq.s32.totalorder %s46, 0
      %p231 = por %p229, %p230
      %p232 = scmp.ne.s32.totalorder %s220, %s221
      %p233 = scmp.eq.s32.totalorder %s47, 3
      %p234 = por %p232, %p233
      %p236 = scmp.ne.s32.totalorder %s221, %s235
      %p237 = scmp.eq.s32.totalorder %s47, 0
      %p238 = por %p236, %p237
      %s240 = sadd.s32 %s239, 1
      %p243 = scmp.eq.s32.totalorder %s41, 3
      %p244 = scmp.ne.s32.totalorder %s239, %s241
      %p245 = scmp.eq.s32.totalorder %s41, 0
      %p246 = por %p244, %p245
      %p247 = scmp.ne.s32.totalorder %s239, %s241
      %p248 = scmp.eq.s32.totalorder %s46, 3
      %p249 = por %p247, %p248
      %p250 = scmp.ne.s32.totalorder %s241, %s242
      %p251 = scmp.eq.s32.totalorder %s46, 0
      %p252 = por %p250, %p251
      %p253 = scmp.ne.s32.totalorder %s241, %s242
      %p254 = scmp.eq.s32.totalorder %s47, 3
      %p255 = por %p253, %p254
      %p257 = scmp.ne.s32.totalorder %s242, %s256
      %p258 = scmp.eq.s32.totalorder %s47, 0
      %p259 = por %p257, %p258
      %s261 = sadd.s32 %s260, 1
      %p264 = scmp.eq.s32.totalorder %s41, 3
      %p265 = scmp.ne.s32.totalorder %s260, %s262
      %p266 = scmp.eq.s32.totalorder %s41, 0
      %p267 = por %p265, %p266
      %p268 = scmp.ne.s32.totalorder %s260, %s262
      %p269 = scmp.eq.s32.totalorder %s46, 3
      %p270 = por %p268, %p269
      %p271 = scmp.ne.s32.totalorder %s262, %s263
      %p272 = scmp.eq.s32.totalorder %s46, 0
      %p273 = por %p271, %p272
      %p274 = scmp.ne.s32.totalorder %s262, %s263
      %p275 = scmp.eq.s32.totalorder %s47, 3
      %p276 = por %p274, %p275
      %p278 = scmp.ne.s32.totalorder %s263, %s277
      %p279 = scmp.eq.s32.totalorder %s47, 0
      %p280 = por %p278, %p279
      %s282 = sadd.s32 %s281, 1
      %p285 = scmp.eq.s32.totalorder %s41, 3
      %p286 = scmp.ne.s32.totalorder %s281, %s283
      %p287 = scmp.eq.s32.totalorder %s41, 0
      %p288 = por %p286, %p287
      %p289 = scmp.ne.s32.totalorder %s281, %s283
      %p290 = scmp.eq.s32.totalorder %s46, 3
      %p291 = por %p289, %p290
      %p292 = scmp.ne.s32.totalorder %s283, %s284
      %p293 = scmp.eq.s32.totalorder %s46, 0
      %p294 = por %p292, %p293
      %p295 = scmp.ne.s32.totalorder %s283, %s284
      %p296 = scmp.eq.s32.totalorder %s47, 3
      %p297 = por %p295, %p296
      %p299 = scmp.ne.s32.totalorder %s284, %s298
      %p300 = scmp.eq.s32.totalorder %s47, 0
      %p301 = por %p299, %p300
      %s303 = sadd.s32 %s302, 1
      %p306 = scmp.eq.s32.totalorder %s41, 3
      %p307 = scmp.ne.s32.totalorder %s302, %s304
      %p308 = scmp.eq.s32.totalorder %s41, 0
      %p309 = por %p307, %p308
      %p310 = scmp.ne.s32.totalorder %s302, %s304
      %p311 = scmp.eq.s32.totalorder %s46, 3
      %p312 = por %p310, %p311
      %p313 = scmp.ne.s32.totalorder %s304, %s305
      %p314 = scmp.eq.s32.totalorder %s46, 0
      %p315 = por %p313, %p314
      %p316 = scmp.ne.s32.totalorder %s304, %s305
      %p317 = scmp.eq.s32.totalorder %s47, 3
      %p318 = por %p316, %p317
      %p320 = scmp.ne.s32.totalorder %s305, %s319
      %p321 = scmp.eq.s32.totalorder %s47, 0
      %p322 = por %p320, %p321
      %s324 = sadd.s32 %s323, 1
      %p327 = scmp.eq.s32.totalorder %s41, 3
      %p328 = scmp.ne.s32.totalorder %s323, %s325
      %p329 = scmp.eq.s32.totalorder %s41, 0
      %p330 = por %p328, %p329
      %p331 = scmp.ne.s32.totalorder %s323, %s325
      %p332 = scmp.eq.s32.totalorder %s46, 3
      %p333 = por %p331, %p332
      %p334 = scmp.ne.s32.totalorder %s325, %s326
      %p335 = scmp.eq.s32.totalorder %s46, 0
      %p336 = por %p334, %p335
      %p337 = scmp.ne.s32.totalorder %s325, %s326
      %p338 = scmp.eq.s32.totalorder %s47, 3
      %p339 = por %p337, %p338
      %p341 = scmp.ne.s32.totalorder %s326, %s340
      %p342 = scmp.eq.s32.totalorder %s47, 0
      %p343 = por %p341, %p342
      %s345 = sadd.s32 %s344, 1
      %p348 = scmp.eq.s32.totalorder %s41, 3
      %p349 = scmp.ne.s32.totalorder %s344, %s346
      %p350 = scmp.eq.s32.totalorder %s41, 0
      %p351 = por %p349, %p350
      %p352 = scmp.ne.s32.totalorder %s344, %s346
      %p353 = scmp.eq.s32.totalorder %s46, 3
      %p354 = por %p352, %p353
      %p355 = scmp.ne.s32.totalorder %s346, %s347
      %p356 = scmp.eq.s32.totalorder %s46, 0
      %p357 = por %p355, %p356
      %p358 = scmp.ne.s32.totalorder %s346, %s347
      %p359 = scmp.eq.s32.totalorder %s47, 3
      %p360 = por %p358, %p359
      %p362 = scmp.ne.s32.totalorder %s347, %s361
      %p363 = scmp.eq.s32.totalorder %s47, 0
      %p364 = por %p362, %p363
      %s366 = sadd.s32 %s365, 1
      %p369 = scmp.eq.s32.totalorder %s41, 3
      %p370 = scmp.ne.s32.totalorder %s365, %s367
      %p371 = scmp.eq.s32.totalorder %s41, 0
      %p372 = por %p370, %p371
      %p373 = scmp.ne.s32.totalorder %s365, %s367
      %p374 = scmp.eq.s32.totalorder %s46, 3
      %p375 = por %p373, %p374
      %p376 = scmp.ne.s32.totalorder %s367, %s368
      %p377 = scmp.eq.s32.totalorder %s46, 0
      %p378 = por %p376, %p377
      %p379 = scmp.ne.s32.totalorder %s367, %s368
      %p380 = scmp.eq.s32.totalorder %s47, 3
      %p381 = por %p379, %p380
      %p383 = scmp.ne.s32.totalorder %s368, %s382
      %p384 = scmp.eq.s32.totalorder %s47, 0
      %p385 = por %p383, %p384
      %s387 = sadd.s32 %s386, 1
      %p390 = scmp.eq.s32.totalorder %s41, 3
      %p391 = scmp.ne.s32.totalorder %s386, %s388
      %p392 = scmp.eq.s32.totalorder %s41, 0
      %p393 = por %p391, %p392
      %p394 = scmp.ne.s32.totalorder %s386, %s388
      %p395 = scmp.eq.s32.totalorder %s46, 3
      %p396 = por %p394, %p395
      %p397 = scmp.ne.s32.totalorder %s388, %s389
      %p398 = scmp.eq.s32.totalorder %s46, 0
      %p399 = por %p397, %p398
      %p400 = scmp.ne.s32.totalorder %s388, %s389
      %p401 = scmp.eq.s32.totalorder %s47, 3
      %p402 = por %p400, %p401
      %p404 = scmp.ne.s32.totalorder %s389, %s403
      %p405 = scmp.eq.s32.totalorder %s47, 0
      %p406 = por %p404, %p405
      %s408 = sadd.s32 %s407, 1
      %p411 = scmp.eq.s32.totalorder %s41, 3
      %p412 = scmp.ne.s32.totalorder %s407, %s409
      %p413 = scmp.eq.s32.totalorder %s41, 0
      %p414 = por %p412, %p413
      %p415 = scmp.ne.s32.totalorder %s407, %s409
      %p416 = scmp.eq.s32.totalorder %s46, 3
      %p417 = por %p415, %p416
      %p418 = scmp.ne.s32.totalorder %s409, %s410
      %p419 = scmp.eq.s32.totalorder %s46, 0
      %p420 = por %p418, %p419
      %p421 = scmp.ne.s32.totalorder %s409, %s410
      %p422 = scmp.eq.s32.totalorder %s47, 3
      %p423 = por %p421, %p422
      %p425 = scmp.ne.s32.totalorder %s410, %s424
      %p426 = scmp.eq.s32.totalorder %s47, 0
      %p427 = por %p425, %p426
      %s429 = sadd.s32 %s428, 1
      %p432 = scmp.eq.s32.totalorder %s41, 3
      %p433 = scmp.ne.s32.totalorder %s428, %s430
      %p434 = scmp.eq.s32.totalorder %s41, 0
      %p435 = por %p433, %p434
      %p436 = scmp.ne.s32.totalorder %s428, %s430
      %p437 = scmp.eq.s32.totalorder %s46, 3
      %p438 = por %p436, %p437
      %p439 = scmp.ne.s32.totalorder %s430, %s431
      %p440 = scmp.eq.s32.totalorder %s46, 0
      %p441 = por %p439, %p440
      %p442 = scmp.ne.s32.totalorder %s430, %s431
      %p443 = scmp.eq.s32.totalorder %s47, 3
      %p444 = por %p442, %p443
      %p446 = scmp.ne.s32.totalorder %s431, %s445
      %p447 = scmp.eq.s32.totalorder %s47, 0
      %p448 = por %p446, %p447
      %s450 = sadd.s32 %s449, 1
      %p453 = scmp.eq.s32.totalorder %s41, 3
      %p454 = scmp.ne.s32.totalorder %s449, %s451
      %p455 = scmp.eq.s32.totalorder %s41, 0
      %p456 = por %p454, %p455
      %p457 = scmp.ne.s32.totalorder %s449, %s451
      %p458 = scmp.eq.s32.totalorder %s46, 3
      %p459 = por %p457, %p458
      %p460 = scmp.ne.s32.totalorder %s451, %s452
      %p461 = scmp.eq.s32.totalorder %s46, 0
      %p462 = por %p460, %p461
      %p463 = scmp.ne.s32.totalorder %s451, %s452
      %p464 = scmp.eq.s32.totalorder %s47, 3
      %p465 = por %p463, %p464
      %p467 = scmp.ne.s32.totalorder %s452, %s466
      %p468 = scmp.eq.s32.totalorder %s47, 0
      %p469 = por %p467, %p468
      %s471 = sadd.s32 %s470, 1
      %p474 = scmp.eq.s32.totalorder %s41, 3
      %p475 = scmp.ne.s32.totalorder %s470, %s472
      %p476 = scmp.eq.s32.totalorder %s41, 0
      %p477 = por %p475, %p476
      %p478 = scmp.ne.s32.totalorder %s470, %s472
      %p479 = scmp.eq.s32.totalorder %s46, 3
      %p480 = por %p478, %p479
      %p481 = scmp.ne.s32.totalorder %s472, %s473
      %p482 = scmp.eq.s32.totalorder %s46, 0
      %p483 = por %p481, %p482
      %p484 = scmp.ne.s32.totalorder %s472, %s473
      %p485 = scmp.eq.s32.totalorder %s47, 3
      %p486 = por %p484, %p485
      %p488 = scmp.ne.s32.totalorder %s473, %s487
      %p489 = scmp.eq.s32.totalorder %s47, 0
      %p490 = por %p488, %p489
      %s492 = sadd.s32 %s491, 1
      %p495 = scmp.eq.s32.totalorder %s41, 3
      %p496 = scmp.ne.s32.totalorder %s491, %s493
      %p497 = scmp.eq.s32.totalorder %s41, 0
      %p498 = por %p496, %p497
      %p499 = scmp.ne.s32.totalorder %s491, %s493
      %p500 = scmp.eq.s32.totalorder %s46, 3
      %p501 = por %p499, %p500
      %p502 = scmp.ne.s32.totalorder %s493, %s494
      %p503 = scmp.eq.s32.totalorder %s46, 0
      %p504 = por %p502, %p503
      %p505 = scmp.ne.s32.totalorder %s493, %s494
      %p506 = scmp.eq.s32.totalorder %s47, 3
      %p507 = por %p505, %p506
      %p509 = scmp.ne.s32.totalorder %s494, %s508
      %p510 = scmp.eq.s32.totalorder %s47, 0
      %p511 = por %p509, %p510
      %s512 = ssub.s32 %s48, %s60
      %p513 = scmp.eq.s32.totalorder %s512, 0
      %s515 = sadd.s32 %s514, 1
      %s516 = scalar_select %p513, %s514, %s515
      %p519 = pneg %p513
      %p520 = scmp.eq.s32.totalorder %s41, 3
      %p521 = por %p519, %p520
      %p522 = scmp.ne.s32.totalorder %s514, %s517
      %p523 = scmp.eq.s32.totalorder %s41, 0
      %p524 = por %p522, %p523
      %p525 = scmp.ne.s32.totalorder %s514, %s517
      %p526 = scmp.eq.s32.totalorder %s46, 3
      %p527 = por %p525, %p526
      %p528 = scmp.ne.s32.totalorder %s517, %s518
      %p529 = scmp.eq.s32.totalorder %s46, 0
      %p530 = por %p528, %p529
      %p531 = scmp.ne.s32.totalorder %s517, %s518
      %p532 = scmp.eq.s32.totalorder %s47, 3
      %p533 = por %p531, %p532
      %p535 = scmp.ne.s32.totalorder %s518, %s534
      %p536 = scmp.eq.s32.totalorder %s47, 0
      %p537 = por %p535, %p536
      %p538 = scmp.le.s32.totalorder 1, %s41
      %p539 = scmp.lt.s32.totalorder %s41, 5
      %p540 = pnand %p538, %p539
      %p541 = pneg %p540
      // Predicated region
      $region9: #{tpu_custom_call.1} parent=5 // pred_check
        _
      $region10: #{tpu_custom_call.1} parent=5 // pred_check_branch
        %543 = sbr.rel (%p540) target = $region12
      $region11: #{tpu_custom_call.1} parent=5 // pred_region
        %s544 = ssub.s32 %s41, 1
        // Predicated region
        $region13: #{tpu_custom_call.1} parent=11 // pred_check
          %p545 = pneg %p126
        $region14: #{tpu_custom_call.1} parent=11 // pred_check_branch
          %547 = sbr.rel (%p545) target = $region16
        $region15: #{tpu_custom_call.1} parent=11 // pred_region
          %s549 = ssub.s32 512, 512
          %550 = vsyncadd [#allocation7], %s549
          %s551 = sshll.u32 [#allocation8], 4
          %s552 = int_to_ptr.vmem [resolvable:$true] %s551
          %557 = dma.hbm_to_vmem [thread:$0]  %s2, 512, %s552, [#allocation7], 128, 128, 8
        $region16: #{tpu_custom_call.1} parent=11 // pred_fallthru
          _
        // Predicated region
        $region17: #{tpu_custom_call.1} parent=11 // pred_check
          %p558 = pneg %p147
        $region18: #{tpu_custom_call.1} parent=11 // pred_check_branch
          %560 = sbr.rel (%p558) target = $region20
        $region19: #{tpu_custom_call.1} parent=11 // pred_region
          _
        $region20: #{tpu_custom_call.1} parent=11 // pred_fallthru
          _
        // Predicated region
        $region21: #{tpu_custom_call.1} parent=11 // pred_check
          %p561 = pneg %p168
        $region22: #{tpu_custom_call.1} parent=11 // pred_check_branch
          %563 = sbr.rel (%p561) target = $region24
        $region23: #{tpu_custom_call.1} parent=11 // pred_region
          _
        $region24: #{tpu_custom_call.1} parent=11 // pred_fallthru
          _
        // Predicated region
        $region25: #{tpu_custom_call.1} parent=11 // pred_check
          %p564 = pneg %p189
        $region26: #{tpu_custom_call.1} parent=11 // pred_check_branch
          %566 = sbr.rel (%p564) target = $region28
        $region27: #{tpu_custom_call.1} parent=11 // pred_region
          _
        $region28: #{tpu_custom_call.1} parent=11 // pred_fallthru
          _
        // Predicated region
        $region29: #{tpu_custom_call.1} parent=11 // pred_check
          %p567 = pneg %p210
        $region30: #{tpu_custom_call.1} parent=11 // pred_check_branch
          %569 = sbr.rel (%p567) target = $region32
        $region31: #{tpu_custom_call.1} parent=11 // pred_region
          %s571 = ssub.s32 32, 32
          %572 = vsyncadd [#allocation10], %s571
          %s573 = sshll.u32 [#allocation9], 4
          %s574 = int_to_ptr.vmem [resolvable:$true] %s573
          %579 = dma.hbm_to_vmem [thread:$0]  %s6, 32, %s574, [#allocation10], 16, 16, 1
        $region32: #{tpu_custom_call.1} parent=11 // pred_fallthru
          _
        // Predicated region
        $region33: #{tpu_custom_call.1} parent=11 // pred_check
          %p580 = pneg %p231
        $region34: #{tpu_custom_call.1} parent=11 // pred_check_branch
          %582 = sbr.rel (%p580) target = $region36
        $region35: #{tpu_custom_call.1} parent=11 // pred_region
          _
        $region36: #{tpu_custom_call.1} parent=11 // pred_fallthru
          _
        // Predicated region
        $region37: #{tpu_custom_call.1} parent=11 // pred_check
          %p583 = pneg %p252
        $region38: #{tpu_custom_call.1} parent=11 // pred_check_branch
          %585 = sbr.rel (%p583) target = $region40
        $region39: #{tpu_custom_call.1} parent=11 // pred_region
          %s587 = ssub.s32 32, 32
          %588 = vsyncadd [#allocation10], %s587
          %s589 = sshll.u32 [#allocation11], 4
          %s590 = int_to_ptr.vmem [resolvable:$true] %s589
          %595 = dma.hbm_to_vmem [thread:$0]  %s8, 32, %s590, [#allocation10], 16, 16, 1
        $region40: #{tpu_custom_call.1} parent=11 // pred_fallthru
          _
        // Predicated region
        $region41: #{tpu_custom_call.1} parent=11 // pred_check
          %p596 = pneg %p273
        $region42: #{tpu_custom_call.1} parent=11 // pred_check_branch
          %598 = sbr.rel (%p596) target = $region44
        $region43: #{tpu_custom_call.1} parent=11 // pred_region
          _
        $region44: #{tpu_custom_call.1} parent=11 // pred_fallthru
          _
        // Predicated region
        $region45: #{tpu_custom_call.1} parent=11 // pred_check
          %p599 = pneg %p294
        $region46: #{tpu_custom_call.1} parent=11 // pred_check_branch
          %601 = sbr.rel (%p599) target = $region48
        $region47: #{tpu_custom_call.1} parent=11 // pred_region
          %s603 = ssub.s32 32, 32
          %604 = vsyncadd [#allocation13], %s603
          %s605 = sshll.u32 [#allocation12], 4
          %s606 = int_to_ptr.vmem [resolvable:$true] %s605
          %611 = dma.hbm_to_vmem [thread:$0]  %s10, 32, %s606, [#allocation13], 16, 16, 1
        $region48: #{tpu_custom_call.1} parent=11 // pred_fallthru
          _
        // Predicated region
        $region49: #{tpu_custom_call.1} parent=11 // pred_check
          %p612 = pneg %p315
        $region50: #{tpu_custom_call.1} parent=11 // pred_check_branch
          %614 = sbr.rel (%p612) target = $region52
        $region51: #{tpu_custom_call.1} parent=11 // pred_region
          _
        $region52: #{tpu_custom_call.1} parent=11 // pred_fallthru
          _
        // Predicated region
        $region53: #{tpu_custom_call.1} parent=11 // pred_check
          %p615 = pneg %p336
        $region54: #{tpu_custom_call.1} parent=11 // pred_check_branch
          %617 = sbr.rel (%p615) target = $region56
        $region55: #{tpu_custom_call.1} parent=11 // pred_region
          %s619 = ssub.s32 32, 32
          %620 = vsyncadd [#allocation13], %s619
          %s621 = sshll.u32 [#allocation14], 4
          %s622 = int_to_ptr.vmem [resolvable:$true] %s621
          %627 = dma.hbm_to_vmem [thread:$0]  %s12, 32, %s622, [#allocation13], 16, 16, 1
        $region56: #{tpu_custom_call.1} parent=11 // pred_fallthru
          _
        // Predicated region
        $region57: #{tpu_custom_call.1} parent=11 // pred_check
          %p628 = pneg %p357
        $region58: #{tpu_custom_call.1} parent=11 // pred_check_branch
          %630 = sbr.rel (%p628) target = $region60
        $region59: #{tpu_custom_call.1} parent=11 // pred_region
          %s632 = ssub.s32 1024, 1024
          %633 = vsyncadd [#allocation16], %s632
          %s634 = sshll.u32 [#allocation15], 4
          %s635 = int_to_ptr.vmem [resolvable:$true] %s634
          %640 = dma.hbm_to_vmem [thread:$0]  %s13, 1024, %s635, [#allocation16], 128, 128, 8
        $region60: #{tpu_custom_call.1} parent=11 // pred_fallthru
          _
        // Predicated region
        $region61: #{tpu_custom_call.1} parent=11 // pred_check
          %p641 = pneg %p378
        $region62: #{tpu_custom_call.1} parent=11 // pred_check_branch
          %643 = sbr.rel (%p641) target = $region64
        $region63: #{tpu_custom_call.1} parent=11 // pred_region
          %s645 = ssub.s32 32, 32
          %646 = vsyncadd [#allocation16], %s645
          %s647 = sshll.u32 [#allocation17], 4
          %s648 = int_to_ptr.vmem [resolvable:$true] %s647
          %653 = dma.hbm_to_vmem [thread:$0]  %s14, 32, %s648, [#allocation16], 16, 16, 1
        $region64: #{tpu_custom_call.1} parent=11 // pred_fallthru
          _
        // Predicated region
        $region65: #{tpu_custom_call.1} parent=11 // pred_check
          %p654 = pneg %p399
        $region66: #{tpu_custom_call.1} parent=11 // pred_check_branch
          %656 = sbr.rel (%p654) target = $region68
        $region67: #{tpu_custom_call.1} parent=11 // pred_region
          %s658 = ssub.s32 32, 32
          %659 = vsyncadd [#allocation19], %s658
          %s660 = sshll.u32 [#allocation18], 4
          %s661 = int_to_ptr.vmem [resolvable:$true] %s660
          %666 = dma.hbm_to_vmem [thread:$0]  %s15, 32, %s661, [#allocation19], 16, 16, 1
        $region68: #{tpu_custom_call.1} parent=11 // pred_fallthru
          _
        // Predicated region
        $region69: #{tpu_custom_call.1} parent=11 // pred_check
          %p667 = pneg %p420
        $region70: #{tpu_custom_call.1} parent=11 // pred_check_branch
          %669 = sbr.rel (%p667) target = $region72
        $region71: #{tpu_custom_call.1} parent=11 // pred_region
          %s671 = ssub.s32 32, 32
          %672 = vsyncadd [#allocation19], %s671
          %s673 = sshll.u32 [#allocation20], 4
          %s674 = int_to_ptr.vmem [resolvable:$true] %s673
          %679 = dma.hbm_to_vmem [thread:$0]  %s16, 32, %s674, [#allocation19], 16, 16, 1
        $region72: #{tpu_custom_call.1} parent=11 // pred_fallthru
          _
        // Predicated region
        $region73: #{tpu_custom_call.1} parent=11 // pred_check
          %p680 = pneg %p441
        $region74: #{tpu_custom_call.1} parent=11 // pred_check_branch
          %682 = sbr.rel (%p680) target = $region76
        $region75: #{tpu_custom_call.1} parent=11 // pred_region
          %s684 = ssub.s32 1024, 1024
          %685 = vsyncadd [#allocation22], %s684
          %s686 = sshll.u32 [#allocation21], 4
          %s687 = int_to_ptr.vmem [resolvable:$true] %s686
          %692 = dma.hbm_to_vmem [thread:$0]  %s17, 1024, %s687, [#allocation22], 128, 128, 8
        $region76: #{tpu_custom_call.1} parent=11 // pred_fallthru
          _
        // Predicated region
        $region77: #{tpu_custom_call.1} parent=11 // pred_check
          %p693 = pneg %p462
        $region78: #{tpu_custom_call.1} parent=11 // pred_check_branch
          %695 = sbr.rel (%p693) target = $region80
        $region79: #{tpu_custom_call.1} parent=11 // pred_region
          %s697 = ssub.s32 32, 32
          %698 = vsyncadd [#allocation22], %s697
          %s699 = sshll.u32 [#allocation23], 4
          %s700 = int_to_ptr.vmem [resolvable:$true] %s699
          %705 = dma.hbm_to_vmem [thread:$0]  %s18, 32, %s700, [#allocation22], 16, 16, 1
        $region80: #{tpu_custom_call.1} parent=11 // pred_fallthru
          _
        // Predicated region
        $region81: #{tpu_custom_call.1} parent=11 // pred_check
          %p706 = pneg %p483
        $region82: #{tpu_custom_call.1} parent=11 // pred_check_branch
          %708 = sbr.rel (%p706) target = $region84
        $region83: #{tpu_custom_call.1} parent=11 // pred_region
          _
        $region84: #{tpu_custom_call.1} parent=11 // pred_fallthru
          _
        // Predicated region
        $region85: #{tpu_custom_call.1} parent=11 // pred_check
          %p709 = pneg %p504
        $region86: #{tpu_custom_call.1} parent=11 // pred_check_branch
          %711 = sbr.rel (%p709) target = $region88
        $region87: #{tpu_custom_call.1} parent=11 // pred_region
          _
        $region88: #{tpu_custom_call.1} parent=11 // pred_fallthru
          _
      $region12: #{tpu_custom_call.1} parent=5 // pred_fallthru
        _
      %p712 = scmp.lt.s32.totalorder %s41, 4
      // Predicated region
      $region89: #{tpu_custom_call.1} parent=5 // pred_check
        %p713 = pneg %p712
      $region90: #{tpu_custom_call.1} parent=5 // pred_check_branch
        %715 = sbr.rel (%p713) target = $region92
      $region91: #{tpu_custom_call.1} parent=5 // pred_region
        // Predicated region
        $region93: #{tpu_custom_call.1} parent=91 // pred_check
          %p716 = pneg %p73
        $region94: #{tpu_custom_call.1} parent=91 // pred_check_branch
          %718 = sbr.rel (%p716) target = $region96
        $region95: #{tpu_custom_call.1} parent=91 // pred_region
          %s719 = sand.u32 %s63, 1
          %s720 = scalar_lea.sflag [#allocation4], %s719
          %s721 = sand.u32 %s63, 1
          %s722 = smul.addr %s721, 8
          %s723 = scalar_lea.vmem [#allocation3], %s722
          %s725 = ssub.s32 128, 128
          %726 = vsyncadd %s720, %s725
          %s727 = smul.addr %s48, 128
          %s728 = scalar_lea.hbm %s0, %s727
          %s730 = sshll.u32 %s723, 4
          %s731 = int_to_ptr.vmem [resolvable:$true] %s730
          %733 = dma.hbm_to_vmem [thread:$0]  %s728, 128, %s731, %s720
        $region96: #{tpu_custom_call.1} parent=91 // pred_fallthru
          _
        // Predicated region
        $region97: #{tpu_custom_call.1} parent=91 // pred_check
          %p734 = pneg %p99
        $region98: #{tpu_custom_call.1} parent=91 // pred_check_branch
          %736 = sbr.rel (%p734) target = $region100
        $region99: #{tpu_custom_call.1} parent=91 // pred_region
          %s737 = sand.u32 %s41, 1
          %s738 = scalar_lea.sflag [#allocation7], %s737
          %s739 = sand.u32 %s89, 1
          %s740 = smul.addr %s739, 8
          %s741 = scalar_lea.vmem [#allocation6], %s740
          %s743 = ssub.s32 128, 128
          %744 = vsyncadd %s738, %s743
          %s745 = smul.addr %s48, 128
          %s746 = scalar_lea.hbm %s1, %s745
          %s748 = sshll.u32 %s741, 4
          %s749 = int_to_ptr.vmem [resolvable:$true] %s748
          %751 = dma.hbm_to_vmem [thread:$0]  %s746, 128, %s749, %s738
        $region100: #{tpu_custom_call.1} parent=91 // pred_fallthru
          _
      $region92: #{tpu_custom_call.1} parent=5 // pred_fallthru
        _
      %p752 = scmp.le.s32.totalorder 1, %s41
      %p753 = scmp.lt.s32.totalorder %s41, 5
      %p754 = pnand %p752, %p753
      %p755 = pneg %p754
      // Predicated region
      $region101: #{tpu_custom_call.1} parent=5 // pred_check
        _
      $region102: #{tpu_custom_call.1} parent=5 // pred_check_branch
        %757 = sbr.rel (%p754) target = $region104
      $region103: #{tpu_custom_call.1} parent=5 // pred_region
        %s758 = ssub.s32 %s41, 1
        %s759 = sand.u32 %s66, 1
        %s760 = scalar_lea.sflag [#allocation4], %s759
        %s761 = sand.u32 %s66, 1
        %s762 = smul.addr %s761, 8
        %s763 = scalar_lea.vmem [#allocation3], %s762
        // Predicated region
        $region105: #{tpu_custom_call.1} parent=103 // pred_check
          %p764 = pneg %p79
        $region106: #{tpu_custom_call.1} parent=103 // pred_check_branch
          %766 = sbr.rel (%p764) target = $region108
        $region107: #{tpu_custom_call.1} parent=103 // pred_region
          %767 = dma.done %s760, 128
        $region108: #{tpu_custom_call.1} parent=103 // pred_fallthru
          _
        %s768 = sand.u32 %s46, 1
        %s769 = scalar_lea.sflag [#allocation7], %s768
        %s770 = sand.u32 %s92, 1
        %s771 = smul.addr %s770, 8
        %s772 = scalar_lea.vmem [#allocation6], %s771
        // Predicated region
        $region109: #{tpu_custom_call.1} parent=103 // pred_check
          %p773 = pneg %p105
        $region110: #{tpu_custom_call.1} parent=103 // pred_check_branch
          %775 = sbr.rel (%p773) target = $region112
        $region111: #{tpu_custom_call.1} parent=103 // pred_region
          %776 = dma.done %s769, 128
        $region112: #{tpu_custom_call.1} parent=103 // pred_fallthru
          _
        // Predicated region
        $region113: #{tpu_custom_call.1} parent=103 // pred_check
          %p777 = pneg %p126
        $region114: #{tpu_custom_call.1} parent=103 // pred_check_branch
          %779 = sbr.rel (%p777) target = $region116
        $region115: #{tpu_custom_call.1} parent=103 // pred_region
          %780 = dma.done [#allocation7], 512
        $region116: #{tpu_custom_call.1} parent=103 // pred_fallthru
          _
        // Predicated region
        $region117: #{tpu_custom_call.1} parent=103 // pred_check
          %p781 = pneg %p210
        $region118: #{tpu_custom_call.1} parent=103 // pred_check_branch
          %783 = sbr.rel (%p781) target = $region120
        $region119: #{tpu_custom_call.1} parent=103 // pred_region
          %784 = dma.done [#allocation10], 32
        $region120: #{tpu_custom_call.1} parent=103 // pred_fallthru
          _
        // Predicated region
        $region121: #{tpu_custom_call.1} parent=103 // pred_check
          %p785 = pneg %p252
        $region122: #{tpu_custom_call.1} parent=103 // pred_check_branch
          %787 = sbr.rel (%p785) target = $region124
        $region123: #{tpu_custom_call.1} parent=103 // pred_region
          %788 = dma.done [#allocation10], 32
        $region124: #{tpu_custom_call.1} parent=103 // pred_fallthru
          _
        // Predicated region
        $region125: #{tpu_custom_call.1} parent=103 // pred_check
          %p789 = pneg %p294
        $region126: #{tpu_custom_call.1} parent=103 // pred_check_branch
          %791 = sbr.rel (%p789) target = $region128
        $region127: #{tpu_custom_call.1} parent=103 // pred_region
          %792 = dma.done [#allocation13], 32
        $region128: #{tpu_custom_call.1} parent=103 // pred_fallthru
          _
        // Predicated region
        $region129: #{tpu_custom_call.1} parent=103 // pred_check
          %p793 = pneg %p336
        $region130: #{tpu_custom_call.1} parent=103 // pred_check_branch
          %795 = sbr.rel (%p793) target = $region132
        $region131: #{tpu_custom_call.1} parent=103 // pred_region
          %796 = dma.done [#allocation13], 32
        $region132: #{tpu_custom_call.1} parent=103 // pred_fallthru
          _
        // Predicated region
        $region133: #{tpu_custom_call.1} parent=103 // pred_check
          %p797 = pneg %p357
        $region134: #{tpu_custom_call.1} parent=103 // pred_check_branch
          %799 = sbr.rel (%p797) target = $region136
        $region135: #{tpu_custom_call.1} parent=103 // pred_region
          %800 = dma.done [#allocation16], 1024
        $region136: #{tpu_custom_call.1} parent=103 // pred_fallthru
          _
        // Predicated region
        $region137: #{tpu_custom_call.1} parent=103 // pred_check
          %p801 = pneg %p378
        $region138: #{tpu_custom_call.1} parent=103 // pred_check_branch
          %803 = sbr.rel (%p801) target = $region140
        $region139: #{tpu_custom_call.1} parent=103 // pred_region
          %804 = dma.done [#allocation16], 32
        $region140: #{tpu_custom_call.1} parent=103 // pred_fallthru
          _
        // Predicated region
        $region141: #{tpu_custom_call.1} parent=103 // pred_check
          %p805 = pneg %p399
        $region142: #{tpu_custom_call.1} parent=103 // pred_check_branch
          %807 = sbr.rel (%p805) target = $region144
        $region143: #{tpu_custom_call.1} parent=103 // pred_region
          %808 = dma.done [#allocation19], 32
        $region144: #{tpu_custom_call.1} parent=103 // pred_fallthru
          _
        // Predicated region
        $region145: #{tpu_custom_call.1} parent=103 // pred_check
          %p809 = pneg %p420
        $region146: #{tpu_custom_call.1} parent=103 // pred_check_branch
          %811 = sbr.rel (%p809) target = $region148
        $region147: #{tpu_custom_call.1} parent=103 // pred_region
          %812 = dma.done [#allocation19], 32
        $region148: #{tpu_custom_call.1} parent=103 // pred_fallthru
          _
        // Predicated region
        $region149: #{tpu_custom_call.1} parent=103 // pred_check
          %p813 = pneg %p441
        $region150: #{tpu_custom_call.1} parent=103 // pred_check_branch
          %815 = sbr.rel (%p813) target = $region152
        $region151: #{tpu_custom_call.1} parent=103 // pred_region
          %816 = dma.done [#allocation22], 1024
        $region152: #{tpu_custom_call.1} parent=103 // pred_fallthru
          _
        // Predicated region
        $region153: #{tpu_custom_call.1} parent=103 // pred_check
          %p817 = pneg %p462
        $region154: #{tpu_custom_call.1} parent=103 // pred_check_branch
          %819 = sbr.rel (%p817) target = $region156
        $region155: #{tpu_custom_call.1} parent=103 // pred_region
          %820 = dma.done [#allocation22], 32
        $region156: #{tpu_custom_call.1} parent=103 // pred_fallthru
          _
        %s821 = sand.u32 %s66, 1
        %s822 = scalar_lea.sflag [#allocation4], %s821
        %s823 = sand.u32 %s66, 1
        %s824 = smul.addr %s823, 8
        %s825 = scalar_lea.vmem [#allocation3], %s824
        %p826 = pneg %p79
        %p827 = pneg %p76
        %s828 = sand.u32 %s46, 1
        %s829 = scalar_lea.sflag [#allocation7], %s828
        %s830 = sand.u32 %s92, 1
        %s831 = smul.addr %s830, 8
        %s832 = scalar_lea.vmem [#allocation6], %s831
        %p833 = pneg %p105
        %p834 = pneg %p102
        %p835 = pneg %p126
        %p836 = pneg %p123
        %p837 = pneg %p147
        %p838 = pneg %p144
        %p839 = pneg %p168
        %p840 = pneg %p165
        %p841 = pneg %p189
        %p842 = pneg %p186
        %p843 = pneg %p210
        %p844 = pneg %p207
        %p845 = pneg %p231
        %p846 = pneg %p228
        %p847 = pneg %p252
        %p848 = pneg %p249
        %p849 = pneg %p273
        %p850 = pneg %p270
        %p851 = pneg %p294
        %p852 = pneg %p291
        %p853 = pneg %p315
        %p854 = pneg %p312
        %p855 = pneg %p336
        %p856 = pneg %p333
        %p857 = pneg %p357
        %p858 = pneg %p354
        %p859 = pneg %p378
        %p860 = pneg %p375
        %p861 = pneg %p399
        %p862 = pneg %p396
        %p863 = pneg %p420
        %p864 = pneg %p417
        %p865 = pneg %p441
        %p866 = pneg %p438
        %p867 = pneg %p462
        %p868 = pneg %p459
        %p869 = pneg %p483
        %p870 = pneg %p480
        %p871 = pneg %p504
        %p872 = pneg %p501
        %p873 = pneg %p530
        %p874 = pneg %p527
        %s875 = sand.u32 %s517, 1
        %s876 = scalar_lea.sflag [#allocation5], %s875
        %s877 = sand.u32 %s517, 1
        %s878 = smul.addr %s877, 8
        %s879 = scalar_lea.vmem [#allocation24], %s878
        %p880 = scmp.eq.s32.totalorder %s51, 0
        // Predicated region
        $region157: #{tpu_custom_call.1} parent=103 // pred_check
          %p881 = pneg %p880
        $region158: #{tpu_custom_call.1} parent=103 // pred_check_branch
          %883 = sbr.rel (%p881) target = $region160
        $region159: #{tpu_custom_call.1} parent=103 // pred_region
          %v884 = vld [vmem:[%s763] sm:$0xff]
          %vm885 = vcmask 261120
          %886 = vst.msk [vmem:[#allocation2] sm:$0xff] %vm885, %v884
        $region160: #{tpu_custom_call.1} parent=103 // pred_fallthru
          _
        %v887 = vld [vmem:[#allocation2] sm:$0xff]
        %v888 = vld [vmem:[%s772] sm:$0xff]
        %v889 = vld [vmem:[#allocation8] sm:$0xff]
        %v890 = vld [vmem:[#allocation8 + $0x8] sm:$0xff]
        %v891 = vld [vmem:[#allocation8 + $0x10] sm:$0xff]
        %v892 = vld [vmem:[#allocation8 + $0x18] sm:$0xff]
        %s893 = scalar_lea.vmem %s3, %s51
        %v894 = vld [vmem:[%s893] sm:$0x1]
        %s895 = scalar_lea.vmem %s4, %s51
        %v896 = vld [vmem:[%s895] sm:$0x1]
        %s897 = scalar_lea.vmem %s5, %s51
        %v898 = vld [vmem:[%s897] sm:$0x1]
        %s899 = scalar_lea.vmem [#allocation9], %s51
        %v900 = vld [vmem:[%s899] sm:$0x1]
        %s901 = smul.u32 %s51, 32
        %s902 = scalar_lea.vmem %s7, %s901
        %v903 = vld [vmem:[%s902] sm:$0xff]
        %v904 = vld [vmem:[%s902 + $0x8] sm:$0xff]
        %v905 = vld [vmem:[%s902 + $0x10] sm:$0xff]
        %v906 = vld [vmem:[%s902 + $0x18] sm:$0xff]
        %s907 = scalar_lea.vmem [#allocation11], %s51
        %v908 = vld [vmem:[%s907] sm:$0x1]
        %s909 = scalar_lea.vmem %s9, %s901
        %v910 = vld [vmem:[%s909] sm:$0xff]
        %v911 = vld [vmem:[%s909 + $0x8] sm:$0xff]
        %v912 = vld [vmem:[%s909 + $0x10] sm:$0xff]
        %v913 = vld [vmem:[%s909 + $0x18] sm:$0xff]
        %s914 = scalar_lea.vmem [#allocation12], %s51
        %v915 = vld [vmem:[%s914] sm:$0x1]
        %s916 = scalar_lea.vmem %s11, %s901
        %v917 = vld [vmem:[%s916] sm:$0xff]
        %v918 = vld [vmem:[%s916 + $0x8] sm:$0xff]
        %v919 = vld [vmem:[%s916 + $0x10] sm:$0xff]
        %v920 = vld [vmem:[%s916 + $0x18] sm:$0xff]
        %s921 = scalar_lea.vmem [#allocation14], %s51
        %v922 = vld [vmem:[%s921] sm:$0x1]
        %s923 = scalar_lea.vmem [#allocation15], %s901
        %v924 = vld [vmem:[%s923] sm:$0xff]
        %v925 = vld [vmem:[%s923 + $0x8] sm:$0xff]
        %v926 = vld [vmem:[%s923 + $0x10] sm:$0xff]
        %v927 = vld [vmem:[%s923 + $0x18] sm:$0xff]
        %s928 = scalar_lea.vmem [#allocation17], %s51
        %v929 = vld [vmem:[%s928] sm:$0x1]
        %s930 = scalar_lea.vmem [#allocation18], %s51
        %v931 = vld [vmem:[%s930] sm:$0x1]
        %s932 = scalar_lea.vmem [#allocation20], %s51
        %v933 = vld [vmem:[%s932] sm:$0x1]
        %s934 = scalar_lea.vmem [#allocation21], %s901
        %v935 = vld [vmem:[%s934] sm:$0xff]
        %v936 = vld [vmem:[%s934 + $0x8] sm:$0xff]
        %v937 = vld [vmem:[%s934 + $0x10] sm:$0xff]
        %v938 = vld [vmem:[%s934 + $0x18] sm:$0xff]
        %s939 = scalar_lea.vmem [#allocation23], %s51
        %v940 = vld [vmem:[%s939] sm:$0x1]
        %s941 = smul.u32 %s51, 64
        %s942 = scalar_lea.vmem %s19, %s941
        %v943 = vld [vmem:[%s942] sm:$0xff]
        %v944 = vld [vmem:[%s942 + $0x8] sm:$0xff]
        %v945 = vld [vmem:[%s942 + $0x10] sm:$0xff]
        %v946 = vld [vmem:[%s942 + $0x18] sm:$0xff]
        %v947 = vld [vmem:[%s942 + $0x20] sm:$0xff]
        %v948 = vld [vmem:[%s942 + $0x28] sm:$0xff]
        %v949 = vld [vmem:[%s942 + $0x30] sm:$0xff]
        %v950 = vld [vmem:[%s942 + $0x38] sm:$0xff]
        %s951 = scalar_lea.vmem %s20, %s51
        %v952 = vld [vmem:[%s951] sm:$0x1]
        %vm953 = vcmask 261120
        %v954 = vsel %vm953, %v887, 0.0
        %955 = vadd.xlane.f32.xlu0 %v954
        %v956 = vpop.xlane.xlu0 %955
        %v957 = vrcp.pop 32.0
        %v958 = vmul.f32 %v956, %v957
        %v959 = vsub.f32 %v887, %v958
        %v960 = vmul.f32 %v959, %v959
        %v961 = vsel %vm953, %v960, 0.0
        %962 = vadd.xlane.f32.xlu0 %v961
        %v963 = vpop.xlane.xlu0 %962
        %v964 = vmul.f32 %v963, %v957
        %v965 = vadd.f32 %v964, 1e-05
        %v966 = vrsqrt.pop %v965
        %v967 = vmul.f32 %v959, %v966
        %v969 = vlaneseq
        %v970 = vshrl.u32 %v969, 7
        %v971 = vsub.s32 0, %v970
        %v972 = vrot.slane %v894, %v971
        %v974 = vmul.f32 %v967, %v972
        %v976 = vlaneseq
        %v977 = vshrl.u32 %v976, 7
        %v978 = vsub.s32 0, %v977
        %v979 = vrot.slane %v896, %v978
        %v981 = vadd.f32 %v974, %v979
        %v982 = vsel %vm953, %v888, 0.0
        %983 = vadd.xlane.f32.xlu0 %v982
        %v984 = vpop.xlane.xlu0 %983
        %v985 = vmul.f32 %v984, %v957
        %v986 = vsub.f32 %v888, %v985
        %v987 = vmul.f32 %v986, %v986
        %v988 = vsel %vm953, %v987, 0.0
        %989 = vadd.xlane.f32.xlu0 %v988
        %v990 = vpop.xlane.xlu0 %989
        %v991 = vmul.f32 %v990, %v957
        %v992 = vadd.f32 %v991, 1e-05
        %v993 = vrsqrt.pop %v992
        %v994 = vmul.f32 %v986, %v993
        %v996 = vlaneseq
        %v997 = vshrl.u32 %v996, 7
        %v998 = vsub.s32 0, %v997
        %v999 = vrot.slane %v898, %v998
        %v1001 = vmul.f32 %v994, %v999
        %v1003 = vlaneseq
        %v1004 = vshrl.u32 %v1003, 7
        %v1005 = vsub.s32 0, %v1004
        %v1006 = vrot.slane %v900, %v1005
        %v1008 = vadd.f32 %v1001, %v1006
        %v1010 = vlaneseq
        %v1011 = vshrl.u32 %v1010, 7
        %v1012 = vsub.s32 0, %v1011
        %v1013 = vrot.slane %v908, %v1012
        %v1016 = vsel %vm953, %v981, 0
        %1018 = vmatprep.subr.mxu0 0.0
        %1019 = vmatpush1.msra.mxu0 %v903
        %1020 = vmatprep.subr.mxu0 0.0
        %1021 = vmatpush1.msra.mxu0 %v904
        %1022 = vmatprep.subr.mxu0 0.0
        %1023 = vmatpush1.msra.mxu0 %v905
        %1024 = vmatprep.subr.mxu0 0.0
        %1025 = vmatpush1.msra.mxu0 %v906
        %1026 = vmatprep.subr.mxu0 0.0
        %1027 = vmatpush1.msra.mxu0 0.0
        %1028 = vmatprep.subr.mxu0 0.0
        %1029 = vmatpush1.msra.mxu0 0.0
        %1030 = vmatprep.subr.mxu0 0.0
        %1031 = vmatpush1.msra.mxu0 0.0
        %1032 = vmatprep.subr.mxu0 0.0
        %1033 = vmatpush1.msra.mxu0 0.0
        %1034 = vmatprep.subr.mxu0 0.0
        %1035 = vmatpush1.msra.mxu0 0.0
        %1036 = vmatprep.subr.mxu0 0.0
        %1037 = vmatpush1.msra.mxu0 0.0
        %1038 = vmatprep.subr.mxu0 0.0
        %1039 = vmatpush1.msra.mxu0 0.0
        %1040 = vmatprep.subr.mxu0 0.0
        %1041 = vmatpush1.msra.mxu0 0.0
        %1042 = vmatprep.subr.mxu0 0.0
        %1043 = vmatpush1.msra.mxu0 0.0
        %1044 = vmatprep.subr.mxu0 0.0
        %1045 = vmatpush1.msra.mxu0 0.0
        %1046 = vmatprep.subr.mxu0 0.0
        %1047 = vmatpush1.msra.mxu0 0.0
        %1048 = vmatprep.subr.mxu0 0.0
        %1049 = vmatpush1.msra.mxu0 0.0
        %1050 = vmatprep.subr.mxu0 0.0
        %1051 = vmatpush1.msra.mxu0 0.0
        %1052 = vmatprep.subr.mxu0 0.0
        %1053 = vmatpush1.msra.mxu0 0.0
        %1054 = vmatprep.subr.mxu0 0.0
        %1055 = vmatpush1.msra.mxu0 0.0
        %1056 = vmatprep.subr.mxu0 0.0
        %1057 = vmatpush1.msra.mxu0 0.0
        %1058 = vmatprep.subr.mxu0 0.0
        %1059 = vmatpush1.msra.mxu0 0.0
        %1060 = vmatprep.subr.mxu0 0.0
        %1061 = vmatpush1.msra.mxu0 0.0
        %1062 = vmatprep.subr.mxu0 0.0
        %1063 = vmatpush1.msra.mxu0 0.0
        %1064 = vmatprep.subr.mxu0 0.0
        %1065 = vmatpush1.msra.mxu0 0.0
        %1066 = vmatprep.subr.mxu0 0.0
        %1067 = vmatpush1.msra.mxu0 0.0
        %1068 = vmatprep.subr.mxu0 0.0
        %1069 = vmatpush1.msra.mxu0 0.0
        %1070 = vmatprep.subr.mxu0 0.0
        %1071 = vmatpush1.msra.mxu0 0.0
        %1072 = vmatprep.subr.mxu0 0.0
        %1073 = vmatpush1.msra.mxu0 0.0
        %1074 = vmatprep.subr.mxu0 0.0
        %1075 = vmatpush1.msra.mxu0 0.0
        %1076 = vmatprep.subr.mxu0 0.0
        %1077 = vmatpush1.msra.mxu0 0.0
        %1078 = vmatprep.subr.mxu0 0.0
        %1079 = vmatpush1.msra.mxu0 0.0
        %1080 = vmatprep.subr.mxu0 0.0
        %1081 = vmatpush1.msra.mxu0 0.0
        %1082 = vmatprep.mubr.f32.mxu0 0.0
        %1083 = vmatmul.mubr.f32.gmra.mrb[0].mxu0 %v1016
        %v1084 = vpop.f32.mrb[0].mxu0
        %v1085 = vadd.f32 %v1013, %v1084
        %v1086 = vpop.f32.mrb[0].mxu0
        %1087 = vdwg.mxu0
        %v1089 = vlaneseq
        %v1090 = vshrl.u32 %v1089, 7
        %v1091 = vsub.s32 0, %v1090
        %v1092 = vrot.slane %v915, %v1091
        %v1095 = vsel %vm953, %v1008, 0
        %1097 = vmatprep.subr.mxu0 0.0
        %1098 = vmatpush1.msra.mxu0 %v910
        %1099 = vmatprep.subr.mxu0 0.0
        %1100 = vmatpush1.msra.mxu0 %v911
        %1101 = vmatprep.subr.mxu0 0.0
        %1102 = vmatpush1.msra.mxu0 %v912
        %1103 = vmatprep.subr.mxu0 0.0
        %1104 = vmatpush1.msra.mxu0 %v913
        %1105 = vmatprep.subr.mxu0 0.0
        %1106 = vmatpush1.msra.mxu0 0.0
        %1107 = vmatprep.subr.mxu0 0.0
        %1108 = vmatpush1.msra.mxu0 0.0
        %1109 = vmatprep.subr.mxu0 0.0
        %1110 = vmatpush1.msra.mxu0 0.0
        %1111 = vmatprep.subr.mxu0 0.0
        %1112 = vmatpush1.msra.mxu0 0.0
        %1113 = vmatprep.subr.mxu0 0.0
        %1114 = vmatpush1.msra.mxu0 0.0
        %1115 = vmatprep.subr.mxu0 0.0
        %1116 = vmatpush1.msra.mxu0 0.0
        %1117 = vmatprep.subr.mxu0 0.0
        %1118 = vmatpush1.msra.mxu0 0.0
        %1119 = vmatprep.subr.mxu0 0.0
        %1120 = vmatpush1.msra.mxu0 0.0
        %1121 = vmatprep.subr.mxu0 0.0
        %1122 = vmatpush1.msra.mxu0 0.0
        %1123 = vmatprep.subr.mxu0 0.0
        %1124 = vmatpush1.msra.mxu0 0.0
        %1125 = vmatprep.subr.mxu0 0.0
        %1126 = vmatpush1.msra.mxu0 0.0
        %1127 = vmatprep.subr.mxu0 0.0
        %1128 = vmatpush1.msra.mxu0 0.0
        %1129 = vmatprep.subr.mxu0 0.0
        %1130 = vmatpush1.msra.mxu0 0.0
        %1131 = vmatprep.subr.mxu0 0.0
        %1132 = vmatpush1.msra.mxu0 0.0
        %1133 = vmatprep.subr.mxu0 0.0
        %1134 = vmatpush1.msra.mxu0 0.0
        %1135 = vmatprep.subr.mxu0 0.0
        %1136 = vmatpush1.msra.mxu0 0.0
        %1137 = vmatprep.subr.mxu0 0.0
        %1138 = vmatpush1.msra.mxu0 0.0
        %1139 = vmatprep.subr.mxu0 0.0
        %1140 = vmatpush1.msra.mxu0 0.0
        %1141 = vmatprep.subr.mxu0 0.0
        %1142 = vmatpush1.msra.mxu0 0.0
        %1143 = vmatprep.subr.mxu0 0.0
        %1144 = vmatpush1.msra.mxu0 0.0
        %1145 = vmatprep.subr.mxu0 0.0
        %1146 = vmatpush1.msra.mxu0 0.0
        %1147 = vmatprep.subr.mxu0 0.0
        %1148 = vmatpush1.msra.mxu0 0.0
        %1149 = vmatprep.subr.mxu0 0.0
        %1150 = vmatpush1.msra.mxu0 0.0
        %1151 = vmatprep.subr.mxu0 0.0
        %1152 = vmatpush1.msra.mxu0 0.0
        %1153 = vmatprep.subr.mxu0 0.0
        %1154 = vmatpush1.msra.mxu0 0.0
        %1155 = vmatprep.subr.mxu0 0.0
        %1156 = vmatpush1.msra.mxu0 0.0
        %1157 = vmatprep.subr.mxu0 0.0
        %1158 = vmatpush1.msra.mxu0 0.0
        %1159 = vmatprep.subr.mxu0 0.0
        %1160 = vmatpush1.msra.mxu0 0.0
        %1161 = vmatprep.mubr.f32.mxu0 0.0
        %1162 = vmatmul.mubr.f32.gmra.mrb[0].mxu0 %v1095
        %v1163 = vpop.f32.mrb[0].mxu0
        %v1164 = vadd.f32 %v1092, %v1163
        %v1165 = vpop.f32.mrb[0].mxu0
        %1166 = vdwg.mxu0
        %v1168 = vlaneseq
        %v1169 = vshrl.u32 %v1168, 7
        %v1170 = vsub.s32 0, %v1169
        %v1171 = vrot.slane %v922, %v1170
        %1173 = vmatprep.subr.mxu0 0.0
        %1174 = vmatpush1.msra.mxu0 %v917
        %1175 = vmatprep.subr.mxu0 0.0
        %1176 = vmatpush1.msra.mxu0 %v918
        %1177 = vmatprep.subr.mxu0 0.0
        %1178 = vmatpush1.msra.mxu0 %v919
        %1179 = vmatprep.subr.mxu0 0.0
        %1180 = vmatpush1.msra.mxu0 %v920
        %1181 = vmatprep.subr.mxu0 0.0
        %1182 = vmatpush1.msra.mxu0 0.0
        %1183 = vmatprep.subr.mxu0 0.0
        %1184 = vmatpush1.msra.mxu0 0.0
        %1185 = vmatprep.subr.mxu0 0.0
        %1186 = vmatpush1.msra.mxu0 0.0
        %1187 = vmatprep.subr.mxu0 0.0
        %1188 = vmatpush1.msra.mxu0 0.0
        %1189 = vmatprep.subr.mxu0 0.0
        %1190 = vmatpush1.msra.mxu0 0.0
        %1191 = vmatprep.subr.mxu0 0.0
        %1192 = vmatpush1.msra.mxu0 0.0
        %1193 = vmatprep.subr.mxu0 0.0
        %1194 = vmatpush1.msra.mxu0 0.0
        %1195 = vmatprep.subr.mxu0 0.0
        %1196 = vmatpush1.msra.mxu0 0.0
        %1197 = vmatprep.subr.mxu0 0.0
        %1198 = vmatpush1.msra.mxu0 0.0
        %1199 = vmatprep.subr.mxu0 0.0
        %1200 = vmatpush1.msra.mxu0 0.0
        %1201 = vmatprep.subr.mxu0 0.0
        %1202 = vmatpush1.msra.mxu0 0.0
        %1203 = vmatprep.subr.mxu0 0.0
        %1204 = vmatpush1.msra.mxu0 0.0
        %1205 = vmatprep.subr.mxu0 0.0
        %1206 = vmatpush1.msra.mxu0 0.0
        %1207 = vmatprep.subr.mxu0 0.0
        %1208 = vmatpush1.msra.mxu0 0.0
        %1209 = vmatprep.subr.mxu0 0.0
        %1210 = vmatpush1.msra.mxu0 0.0
        %1211 = vmatprep.subr.mxu0 0.0
        %1212 = vmatpush1.msra.mxu0 0.0
        %1213 = vmatprep.subr.mxu0 0.0
        %1214 = vmatpush1.msra.mxu0 0.0
        %1215 = vmatprep.subr.mxu0 0.0
        %1216 = vmatpush1.msra.mxu0 0.0
        %1217 = vmatprep.subr.mxu0 0.0
        %1218 = vmatpush1.msra.mxu0 0.0
        %1219 = vmatprep.subr.mxu0 0.0
        %1220 = vmatpush1.msra.mxu0 0.0
        %1221 = vmatprep.subr.mxu0 0.0
        %1222 = vmatpush1.msra.mxu0 0.0
        %1223 = vmatprep.subr.mxu0 0.0
        %1224 = vmatpush1.msra.mxu0 0.0
        %1225 = vmatprep.subr.mxu0 0.0
        %1226 = vmatpush1.msra.mxu0 0.0
        %1227 = vmatprep.subr.mxu0 0.0
        %1228 = vmatpush1.msra.mxu0 0.0
        %1229 = vmatprep.subr.mxu0 0.0
        %1230 = vmatpush1.msra.mxu0 0.0
        %1231 = vmatprep.subr.mxu0 0.0
        %1232 = vmatpush1.msra.mxu0 0.0
        %1233 = vmatprep.subr.mxu0 0.0
        %1234 = vmatpush1.msra.mxu0 0.0
        %1235 = vmatprep.subr.mxu0 0.0
        %1236 = vmatpush1.msra.mxu0 0.0
        %1237 = vmatprep.mubr.f32.mxu0 0.0
        %1238 = vmatmul.mubr.f32.gmra.mrb[0].mxu0 %v1095
        %v1239 = vpop.f32.mrb[0].mxu0
        %v1240 = vadd.f32 %v1171, %v1239
        %v1241 = vpop.f32.mrb[0].mxu0
        %1242 = vdwg.mxu0
        %v1243 = vsel %vm953, %v1085, -inf
        %1244 = vmax.xlane.f32.xlu0 %v1243
        %v1245 = vpop.xlane.xlu0 %1244
        %v1246 = vsub.f32 %v1085, %v1245
        %v1247 = vmul.f32 %v1246, 1.442695
        %v1248 = vpow.pop %v1247
        %v1250 = vsel %vm953, %v1248, 0
        %1252 = vmatprep.subr.mxu0 0.0
        %1253 = vmatpush1.msra.mxu0 %v889
        %1254 = vmatprep.subr.mxu0 0.0
        %1255 = vmatpush1.msra.mxu0 %v890
        %1256 = vmatprep.subr.mxu0 0.0
        %1257 = vmatpush1.msra.mxu0 %v891
        %1258 = vmatprep.subr.mxu0 0.0
        %1259 = vmatpush1.msra.mxu0 %v892
        %1260 = vmatprep.subr.mxu0 0.0
        %1261 = vmatpush1.msra.mxu0 0.0
        %1262 = vmatprep.subr.mxu0 0.0
        %1263 = vmatpush1.msra.mxu0 0.0
        %1264 = vmatprep.subr.mxu0 0.0
        %1265 = vmatpush1.msra.mxu0 0.0
        %1266 = vmatprep.subr.mxu0 0.0
        %1267 = vmatpush1.msra.mxu0 0.0
        %1268 = vmatprep.subr.mxu0 0.0
        %1269 = vmatpush1.msra.mxu0 0.0
        %1270 = vmatprep.subr.mxu0 0.0
        %1271 = vmatpush1.msra.mxu0 0.0
        %1272 = vmatprep.subr.mxu0 0.0
        %1273 = vmatpush1.msra.mxu0 0.0
        %1274 = vmatprep.subr.mxu0 0.0
        %1275 = vmatpush1.msra.mxu0 0.0
        %1276 = vmatprep.subr.mxu0 0.0
        %1277 = vmatpush1.msra.mxu0 0.0
        %1278 = vmatprep.subr.mxu0 0.0
        %1279 = vmatpush1.msra.mxu0 0.0
        %1280 = vmatprep.subr.mxu0 0.0
        %1281 = vmatpush1.msra.mxu0 0.0
        %1282 = vmatprep.subr.mxu0 0.0
        %1283 = vmatpush1.msra.mxu0 0.0
        %1284 = vmatprep.subr.mxu0 0.0
        %1285 = vmatpush1.msra.mxu0 0.0
        %1286 = vmatprep.subr.mxu0 0.0
        %1287 = vmatpush1.msra.mxu0 0.0
        %1288 = vmatprep.subr.mxu0 0.0
        %1289 = vmatpush1.msra.mxu0 0.0
        %1290 = vmatprep.subr.mxu0 0.0
        %1291 = vmatpush1.msra.mxu0 0.0
        %1292 = vmatprep.subr.mxu0 0.0
        %1293 = vmatpush1.msra.mxu0 0.0
        %1294 = vmatprep.subr.mxu0 0.0
        %1295 = vmatpush1.msra.mxu0 0.0
        %1296 = vmatprep.subr.mxu0 0.0
        %1297 = vmatpush1.msra.mxu0 0.0
        %1298 = vmatprep.subr.mxu0 0.0
        %1299 = vmatpush1.msra.mxu0 0.0
        %1300 = vmatprep.subr.mxu0 0.0
        %1301 = vmatpush1.msra.mxu0 0.0
        %1302 = vmatprep.subr.mxu0 0.0
        %1303 = vmatpush1.msra.mxu0 0.0
        %1304 = vmatprep.subr.mxu0 0.0
        %1305 = vmatpush1.msra.mxu0 0.0
        %1306 = vmatprep.subr.mxu0 0.0
        %1307 = vmatpush1.msra.mxu0 0.0
        %1308 = vmatprep.subr.mxu0 0.0
        %1309 = vmatpush1.msra.mxu0 0.0
        %1310 = vmatprep.subr.mxu0 0.0
        %1311 = vmatpush1.msra.mxu0 0.0
        %1312 = vmatprep.subr.mxu0 0.0
        %1313 = vmatpush1.msra.mxu0 0.0
        %1314 = vmatprep.subr.mxu0 0.0
        %1315 = vmatpush1.msra.mxu0 0.0
        %1316 = vmatprep.mubr.f32.mxu0 0.0
        %1317 = vmatmul.mubr.f32.gmra.mrb[0].mxu0 %v1250
        %v1318 = vpop.f32.mrb[0].mxu0
        %v1319 = vadd.f32 0.0, %v1318
        %v1320 = vpop.f32.mrb[0].mxu0
        %1321 = vdwg.mxu0
        %v1322 = vrcp.pop %v1319
        %v1323 = vmul.f32 %v1248, %v1322
        %v1324 = vsel %vm953, %v1164, -inf
        %1325 = vmax.xlane.f32.xlu0 %v1324
        %v1326 = vpop.xlane.xlu0 %1325
        %v1327 = vsub.f32 %v1164, %v1326
        %v1328 = vmul.f32 %v1327, 1.442695
        %v1329 = vpow.pop %v1328
        %v1331 = vsel %vm953, %v1329, 0
        %1333 = vmatprep.subr.mxu0 0.0
        %1334 = vmatpush1.msra.mxu0 %v889
        %1335 = vmatprep.subr.mxu0 0.0
        %1336 = vmatpush1.msra.mxu0 %v890
        %1337 = vmatprep.subr.mxu0 0.0
        %1338 = vmatpush1.msra.mxu0 %v891
        %1339 = vmatprep.subr.mxu0 0.0
        %1340 = vmatpush1.msra.mxu0 %v892
        %1341 = vmatprep.subr.mxu0 0.0
        %1342 = vmatpush1.msra.mxu0 0.0
        %1343 = vmatprep.subr.mxu0 0.0
        %1344 = vmatpush1.msra.mxu0 0.0
        %1345 = vmatprep.subr.mxu0 0.0
        %1346 = vmatpush1.msra.mxu0 0.0
        %1347 = vmatprep.subr.mxu0 0.0
        %1348 = vmatpush1.msra.mxu0 0.0
        %1349 = vmatprep.subr.mxu0 0.0
        %1350 = vmatpush1.msra.mxu0 0.0
        %1351 = vmatprep.subr.mxu0 0.0
        %1352 = vmatpush1.msra.mxu0 0.0
        %1353 = vmatprep.subr.mxu0 0.0
        %1354 = vmatpush1.msra.mxu0 0.0
        %1355 = vmatprep.subr.mxu0 0.0
        %1356 = vmatpush1.msra.mxu0 0.0
        %1357 = vmatprep.subr.mxu0 0.0
        %1358 = vmatpush1.msra.mxu0 0.0
        %1359 = vmatprep.subr.mxu0 0.0
        %1360 = vmatpush1.msra.mxu0 0.0
        %1361 = vmatprep.subr.mxu0 0.0
        %1362 = vmatpush1.msra.mxu0 0.0
        %1363 = vmatprep.subr.mxu0 0.0
        %1364 = vmatpush1.msra.mxu0 0.0
        %1365 = vmatprep.subr.mxu0 0.0
        %1366 = vmatpush1.msra.mxu0 0.0
        %1367 = vmatprep.subr.mxu0 0.0
        %1368 = vmatpush1.msra.mxu0 0.0
        %1369 = vmatprep.subr.mxu0 0.0
        %1370 = vmatpush1.msra.mxu0 0.0
        %1371 = vmatprep.subr.mxu0 0.0
        %1372 = vmatpush1.msra.mxu0 0.0
        %1373 = vmatprep.subr.mxu0 0.0
        %1374 = vmatpush1.msra.mxu0 0.0
        %1375 = vmatprep.subr.mxu0 0.0
        %1376 = vmatpush1.msra.mxu0 0.0
        %1377 = vmatprep.subr.mxu0 0.0
        %1378 = vmatpush1.msra.mxu0 0.0
        %1379 = vmatprep.subr.mxu0 0.0
        %1380 = vmatpush1.msra.mxu0 0.0
        %1381 = vmatprep.subr.mxu0 0.0
        %1382 = vmatpush1.msra.mxu0 0.0
        %1383 = vmatprep.subr.mxu0 0.0
        %1384 = vmatpush1.msra.mxu0 0.0
        %1385 = vmatprep.subr.mxu0 0.0
        %1386 = vmatpush1.msra.mxu0 0.0
        %1387 = vmatprep.subr.mxu0 0.0
        %1388 = vmatpush1.msra.mxu0 0.0
        %1389 = vmatprep.subr.mxu0 0.0
        %1390 = vmatpush1.msra.mxu0 0.0
        %1391 = vmatprep.subr.mxu0 0.0
        %1392 = vmatpush1.msra.mxu0 0.0
        %1393 = vmatprep.subr.mxu0 0.0
        %1394 = vmatpush1.msra.mxu0 0.0
        %1395 = vmatprep.subr.mxu0 0.0
        %1396 = vmatpush1.msra.mxu0 0.0
        %1397 = vmatprep.mubr.f32.mxu0 0.0
        %1398 = vmatmul.mubr.f32.gmra.mrb[0].mxu0 %v1331
        %v1399 = vpop.f32.mrb[0].mxu0
        %v1400 = vadd.f32 0.0, %v1399
        %v1401 = vpop.f32.mrb[0].mxu0
        %1402 = vdwg.mxu0
        %v1403 = vrcp.pop %v1400
        %v1404 = vmul.f32 %v1329, %v1403
        %1405 = vxpose.xlu0.b32.start [1/16] %v1404, 128
        %1406 = vxpose.xlu0.b32.cont [2/16] 0.0, 128
        %1407 = vxpose.xlu0.b32.cont [3/16] 0.0, 128
        %1408 = vxpose.xlu0.b32.cont [4/16] 0.0, 128
        %1409 = vxpose.xlu0.b32.cont [5/16] 0.0, 128
        %1410 = vxpose.xlu0.b32.cont [6/16] 0.0, 128
        %1411 = vxpose.xlu0.b32.cont [7/16] 0.0, 128
        %1412 = vxpose.xlu0.b32.cont [8/16] 0.0, 128
        %1413 = vxpose.xlu0.b32.cont [9/16] 0.0, 128
        %1414 = vxpose.xlu0.b32.cont [10/16] 0.0, 128
        %1415 = vxpose.xlu0.b32.cont [11/16] 0.0, 128
        %1416 = vxpose.xlu0.b32.cont [12/16] 0.0, 128
        %1417 = vxpose.xlu0.b32.cont [13/16] 0.0, 128
        %1418 = vxpose.xlu0.b32.cont [14/16] 0.0, 128
        %1419 = vxpose.xlu0.b32.cont [15/16] 0.0, 128
        %1420 = vxpose.xlu0.b32.end [16/16] 0.0, 128
        %v1421 = vpop.trf.xlu0
        %v1422 = vpop.trf.xlu0
        %v1423 = vpop.trf.xlu0
        %v1424 = vpop.trf.xlu0
        %v1425 = vpop.trf.xlu0
        %v1426 = vpop.trf.xlu0
        %v1427 = vpop.trf.xlu0
        %v1428 = vpop.trf.xlu0
        %v1429 = vpop.trf.xlu0
        %v1430 = vpop.trf.xlu0
        %v1431 = vpop.trf.xlu0
        %v1432 = vpop.trf.xlu0
        %v1433 = vpop.trf.xlu0
        %v1434 = vpop.trf.xlu0
        %v1435 = vpop.trf.xlu0
        %v1436 = vpop.trf.xlu0
        %vm1437 = vcmask 64512
        %v1439 = vsel %vm1437, %v1421, 0
        %v1442 = vsel %vm1437, %v1422, 0
        %v1445 = vsel %vm1437, %v1423, 0
        %v1448 = vsel %vm1437, %v1424, 0
        %1450 = vmatprep.subr.mxu0 0.0
        %1451 = vmatpush1.msra.mxu0 %v1240
        %1452 = vmatprep.subr.mxu0 0.0
        %1453 = vmatpush1.msra.mxu0 0.0
        %1454 = vmatprep.subr.mxu0 0.0
        %1455 = vmatpush1.msra.mxu0 0.0
        %1456 = vmatprep.subr.mxu0 0.0
        %1457 = vmatpush1.msra.mxu0 0.0
        %1458 = vmatprep.subr.mxu0 0.0
        %1459 = vmatpush1.msra.mxu0 0.0
        %1460 = vmatprep.subr.mxu0 0.0
        %1461 = vmatpush1.msra.mxu0 0.0
        %1462 = vmatprep.subr.mxu0 0.0
        %1463 = vmatpush1.msra.mxu0 0.0
        %1464 = vmatprep.subr.mxu0 0.0
        %1465 = vmatpush1.msra.mxu0 0.0
        %1466 = vmatprep.subr.mxu0 0.0
        %1467 = vmatpush1.msra.mxu0 0.0
        %1468 = vmatprep.subr.mxu0 0.0
        %1469 = vmatpush1.msra.mxu0 0.0
        %1470 = vmatprep.subr.mxu0 0.0
        %1471 = vmatpush1.msra.mxu0 0.0
        %1472 = vmatprep.subr.mxu0 0.0
        %1473 = vmatpush1.msra.mxu0 0.0
        %1474 = vmatprep.subr.mxu0 0.0
        %1475 = vmatpush1.msra.mxu0 0.0
        %1476 = vmatprep.subr.mxu0 0.0
        %1477 = vmatpush1.msra.mxu0 0.0
        %1478 = vmatprep.subr.mxu0 0.0
        %1479 = vmatpush1.msra.mxu0 0.0
        %1480 = vmatprep.subr.mxu0 0.0
        %1481 = vmatpush1.msra.mxu0 0.0
        %1482 = vmatprep.subr.mxu0 0.0
        %1483 = vmatpush1.msra.mxu0 0.0
        %1484 = vmatprep.subr.mxu0 0.0
        %1485 = vmatpush1.msra.mxu0 0.0
        %1486 = vmatprep.subr.mxu0 0.0
        %1487 = vmatpush1.msra.mxu0 0.0
        %1488 = vmatprep.subr.mxu0 0.0
        %1489 = vmatpush1.msra.mxu0 0.0
        %1490 = vmatprep.subr.mxu0 0.0
        %1491 = vmatpush1.msra.mxu0 0.0
        %1492 = vmatprep.subr.mxu0 0.0
        %1493 = vmatpush1.msra.mxu0 0.0
        %1494 = vmatprep.subr.mxu0 0.0
        %1495 = vmatpush1.msra.mxu0 0.0
        %1496 = vmatprep.subr.mxu0 0.0
        %1497 = vmatpush1.msra.mxu0 0.0
        %1498 = vmatprep.subr.mxu0 0.0
        %1499 = vmatpush1.msra.mxu0 0.0
        %1500 = vmatprep.subr.mxu0 0.0
        %1501 = vmatpush1.msra.mxu0 0.0
        %1502 = vmatprep.subr.mxu0 0.0
        %1503 = vmatpush1.msra.mxu0 0.0
        %1504 = vmatprep.subr.mxu0 0.0
        %1505 = vmatpush1.msra.mxu0 0.0
        %1506 = vmatprep.subr.mxu0 0.0
        %1507 = vmatpush1.msra.mxu0 0.0
        %1508 = vmatprep.subr.mxu0 0.0
        %1509 = vmatpush1.msra.mxu0 0.0
        %1510 = vmatprep.subr.mxu0 0.0
        %1511 = vmatpush1.msra.mxu0 0.0
        %1512 = vmatprep.subr.mxu0 0.0
        %1513 = vmatpush1.msra.mxu0 0.0
        %1514 = vmatprep.mubr.f32.mxu0 0.0
        %1515 = vmatmul.mubr.f32.gmra.mrb[0].mxu0 %v1439
        %v1516 = vpop.f32.mrb[0].mxu0
        %v1517 = vadd.f32 0.0, %v1516
        %v1518 = vpop.f32.mrb[0].mxu0
        %1519 = vmatprep.mubr.f32.mxu0 0.0
        %1520 = vmatmul.mubr.f32.gmra.mrb[0].mxu0 %v1442
        %v1521 = vpop.f32.mrb[0].mxu0
        %v1522 = vadd.f32 0.0, %v1521
        %v1523 = vpop.f32.mrb[0].mxu0
        %1524 = vmatprep.mubr.f32.mxu0 0.0
        %1525 = vmatmul.mubr.f32.gmra.mrb[0].mxu0 %v1445
        %v1526 = vpop.f32.mrb[0].mxu0
        %v1527 = vadd.f32 0.0, %v1526
        %v1528 = vpop.f32.mrb[0].mxu0
        %1529 = vmatprep.mubr.f32.mxu0 0.0
        %1530 = vmatmul.mubr.f32.gmra.mrb[0].mxu0 %v1448
        %v1531 = vpop.f32.mrb[0].mxu0
        %v1532 = vadd.f32 0.0, %v1531
        %v1533 = vpop.f32.mrb[0].mxu0
        %1534 = vdwg.mxu0
        %v1535 = vmul.f32 %v1517, %v889
        %v1536 = vmul.f32 %v1522, %v890
        %v1537 = vmul.f32 %v1527, %v891
        %v1538 = vmul.f32 %v1532, %v892
        %v1540 = vsel %vm953, %v1323, 0
        %1542 = vmatprep.subr.mxu0 0.0
        %1543 = vmatpush1.msra.mxu0 %v1535
        %1544 = vmatprep.subr.mxu0 0.0
        %1545 = vmatpush1.msra.mxu0 %v1536
        %1546 = vmatprep.subr.mxu0 0.0
        %1547 = vmatpush1.msra.mxu0 %v1537
        %1548 = vmatprep.subr.mxu0 0.0
        %1549 = vmatpush1.msra.mxu0 %v1538
        %1550 = vmatprep.subr.mxu0 0.0
        %1551 = vmatpush1.msra.mxu0 0.0
        %1552 = vmatprep.subr.mxu0 0.0
        %1553 = vmatpush1.msra.mxu0 0.0
        %1554 = vmatprep.subr.mxu0 0.0
        %1555 = vmatpush1.msra.mxu0 0.0
        %1556 = vmatprep.subr.mxu0 0.0
        %1557 = vmatpush1.msra.mxu0 0.0
        %1558 = vmatprep.subr.mxu0 0.0
        %1559 = vmatpush1.msra.mxu0 0.0
        %1560 = vmatprep.subr.mxu0 0.0
        %1561 = vmatpush1.msra.mxu0 0.0
        %1562 = vmatprep.subr.mxu0 0.0
        %1563 = vmatpush1.msra.mxu0 0.0
        %1564 = vmatprep.subr.mxu0 0.0
        %1565 = vmatpush1.msra.mxu0 0.0
        %1566 = vmatprep.subr.mxu0 0.0
        %1567 = vmatpush1.msra.mxu0 0.0
        %1568 = vmatprep.subr.mxu0 0.0
        %1569 = vmatpush1.msra.mxu0 0.0
        %1570 = vmatprep.subr.mxu0 0.0
        %1571 = vmatpush1.msra.mxu0 0.0
        %1572 = vmatprep.subr.mxu0 0.0
        %1573 = vmatpush1.msra.mxu0 0.0
        %1574 = vmatprep.subr.mxu0 0.0
        %1575 = vmatpush1.msra.mxu0 0.0
        %1576 = vmatprep.subr.mxu0 0.0
        %1577 = vmatpush1.msra.mxu0 0.0
        %1578 = vmatprep.subr.mxu0 0.0
        %1579 = vmatpush1.msra.mxu0 0.0
        %1580 = vmatprep.subr.mxu0 0.0
        %1581 = vmatpush1.msra.mxu0 0.0
        %1582 = vmatprep.subr.mxu0 0.0
        %1583 = vmatpush1.msra.mxu0 0.0
        %1584 = vmatprep.subr.mxu0 0.0
        %1585 = vmatpush1.msra.mxu0 0.0
        %1586 = vmatprep.subr.mxu0 0.0
        %1587 = vmatpush1.msra.mxu0 0.0
        %1588 = vmatprep.subr.mxu0 0.0
        %1589 = vmatpush1.msra.mxu0 0.0
        %1590 = vmatprep.subr.mxu0 0.0
        %1591 = vmatpush1.msra.mxu0 0.0
        %1592 = vmatprep.subr.mxu0 0.0
        %1593 = vmatpush1.msra.mxu0 0.0
        %1594 = vmatprep.subr.mxu0 0.0
        %1595 = vmatpush1.msra.mxu0 0.0
        %1596 = vmatprep.subr.mxu0 0.0
        %1597 = vmatpush1.msra.mxu0 0.0
        %1598 = vmatprep.subr.mxu0 0.0
        %1599 = vmatpush1.msra.mxu0 0.0
        %1600 = vmatprep.subr.mxu0 0.0
        %1601 = vmatpush1.msra.mxu0 0.0
        %1602 = vmatprep.subr.mxu0 0.0
        %1603 = vmatpush1.msra.mxu0 0.0
        %1604 = vmatprep.subr.mxu0 0.0
        %1605 = vmatpush1.msra.mxu0 0.0
        %1606 = vmatprep.mubr.f32.mxu0 0.0
        %1607 = vmatmul.mubr.f32.gmra.mrb[0].mxu0 %v1540
        %v1608 = vpop.f32.mrb[0].mxu0
        %v1609 = vadd.f32 0.0, %v1608
        %v1610 = vpop.f32.mrb[0].mxu0
        %1611 = vdwg.mxu0
        %v1613 = vlaneseq
        %v1614 = vshrl.u32 %v1613, 7
        %v1615 = vsub.s32 0, %v1614
        %v1616 = vrot.slane %v929, %v1615
        %v1619 = vsel %vm953, %v887, 0
        %1621 = vmatprep.subr.mxu0 0.0
        %1622 = vmatpush1.msra.mxu0 %v924
        %1623 = vmatprep.subr.mxu0 0.0
        %1624 = vmatpush1.msra.mxu0 %v925
        %1625 = vmatprep.subr.mxu0 0.0
        %1626 = vmatpush1.msra.mxu0 %v926
        %1627 = vmatprep.subr.mxu0 0.0
        %1628 = vmatpush1.msra.mxu0 %v927
        %1629 = vmatprep.subr.mxu0 0.0
        %1630 = vmatpush1.msra.mxu0 0.0
        %1631 = vmatprep.subr.mxu0 0.0
        %1632 = vmatpush1.msra.mxu0 0.0
        %1633 = vmatprep.subr.mxu0 0.0
        %1634 = vmatpush1.msra.mxu0 0.0
        %1635 = vmatprep.subr.mxu0 0.0
        %1636 = vmatpush1.msra.mxu0 0.0
        %1637 = vmatprep.subr.mxu0 0.0
        %1638 = vmatpush1.msra.mxu0 0.0
        %1639 = vmatprep.subr.mxu0 0.0
        %1640 = vmatpush1.msra.mxu0 0.0
        %1641 = vmatprep.subr.mxu0 0.0
        %1642 = vmatpush1.msra.mxu0 0.0
        %1643 = vmatprep.subr.mxu0 0.0
        %1644 = vmatpush1.msra.mxu0 0.0
        %1645 = vmatprep.subr.mxu0 0.0
        %1646 = vmatpush1.msra.mxu0 0.0
        %1647 = vmatprep.subr.mxu0 0.0
        %1648 = vmatpush1.msra.mxu0 0.0
        %1649 = vmatprep.subr.mxu0 0.0
        %1650 = vmatpush1.msra.mxu0 0.0
        %1651 = vmatprep.subr.mxu0 0.0
        %1652 = vmatpush1.msra.mxu0 0.0
        %1653 = vmatprep.subr.mxu0 0.0
        %1654 = vmatpush1.msra.mxu0 0.0
        %1655 = vmatprep.subr.mxu0 0.0
        %1656 = vmatpush1.msra.mxu0 0.0
        %1657 = vmatprep.subr.mxu0 0.0
        %1658 = vmatpush1.msra.mxu0 0.0
        %1659 = vmatprep.subr.mxu0 0.0
        %1660 = vmatpush1.msra.mxu0 0.0
        %1661 = vmatprep.subr.mxu0 0.0
        %1662 = vmatpush1.msra.mxu0 0.0
        %1663 = vmatprep.subr.mxu0 0.0
        %1664 = vmatpush1.msra.mxu0 0.0
        %1665 = vmatprep.subr.mxu0 0.0
        %1666 = vmatpush1.msra.mxu0 0.0
        %1667 = vmatprep.subr.mxu0 0.0
        %1668 = vmatpush1.msra.mxu0 0.0
        %1669 = vmatprep.subr.mxu0 0.0
        %1670 = vmatpush1.msra.mxu0 0.0
        %1671 = vmatprep.subr.mxu0 0.0
        %1672 = vmatpush1.msra.mxu0 0.0
        %1673 = vmatprep.subr.mxu0 0.0
        %1674 = vmatpush1.msra.mxu0 0.0
        %1675 = vmatprep.subr.mxu0 0.0
        %1676 = vmatpush1.msra.mxu0 0.0
        %1677 = vmatprep.subr.mxu0 0.0
        %1678 = vmatpush1.msra.mxu0 0.0
        %1679 = vmatprep.subr.mxu0 0.0
        %1680 = vmatpush1.msra.mxu0 0.0
        %1681 = vmatprep.subr.mxu0 0.0
        %1682 = vmatpush1.msra.mxu0 0.0
        %1683 = vmatprep.subr.mxu0 0.0
        %1684 = vmatpush1.msra.mxu0 0.0
        %1685 = vmatprep.mubr.f32.mxu0 0.0
        %1686 = vmatmul.mubr.f32.gmra.mrb[0].mxu0 %v1619
        %v1687 = vpop.f32.mrb[0].mxu0
        %v1688 = vadd.f32 %v1616, %v1687
        %v1689 = vpop.f32.mrb[0].mxu0
        %1690 = vdwg.mxu0
        %v1691 = vadd.f32 %v1688, %v1609
        %v1692 = vsel %vm953, %v1691, 0.0
        %1693 = vadd.xlane.f32.xlu0 %v1692
        %v1694 = vpop.xlane.xlu0 %1693
        %v1695 = vmul.f32 %v1694, %v957
        %v1696 = vsub.f32 %v1691, %v1695
        %v1697 = vmul.f32 %v1696, %v1696
        %v1698 = vsel %vm953, %v1697, 0.0
        %1699 = vadd.xlane.f32.xlu0 %v1698
        %v1700 = vpop.xlane.xlu0 %1699
        %v1701 = vmul.f32 %v1700, %v957
        %v1702 = vadd.f32 %v1701, 1e-05
        %v1703 = vrsqrt.pop %v1702
        %v1704 = vmul.f32 %v1696, %v1703
        %v1706 = vlaneseq
        %v1707 = vshrl.u32 %v1706, 7
        %v1708 = vsub.s32 0, %v1707
        %v1709 = vrot.slane %v931, %v1708
        %v1711 = vmul.f32 %v1704, %v1709
        %v1713 = vlaneseq
        %v1714 = vshrl.u32 %v1713, 7
        %v1715 = vsub.s32 0, %v1714
        %v1716 = vrot.slane %v933, %v1715
        %v1718 = vadd.f32 %v1711, %v1716
        %v1720 = vlaneseq
        %v1721 = vshrl.u32 %v1720, 7
        %v1722 = vsub.s32 0, %v1721
        %v1723 = vrot.slane %v940, %v1722
        %v1726 = vsel %vm953, %v1718, 0
        %1728 = vmatprep.subr.mxu0 0.0
        %1729 = vmatpush1.msra.mxu0 %v935
        %1730 = vmatprep.subr.mxu0 0.0
        %1731 = vmatpush1.msra.mxu0 %v936
        %1732 = vmatprep.subr.mxu0 0.0
        %1733 = vmatpush1.msra.mxu0 %v937
        %1734 = vmatprep.subr.mxu0 0.0
        %1735 = vmatpush1.msra.mxu0 %v938
        %1736 = vmatprep.subr.mxu0 0.0
        %1737 = vmatpush1.msra.mxu0 0.0
        %1738 = vmatprep.subr.mxu0 0.0
        %1739 = vmatpush1.msra.mxu0 0.0
        %1740 = vmatprep.subr.mxu0 0.0
        %1741 = vmatpush1.msra.mxu0 0.0
        %1742 = vmatprep.subr.mxu0 0.0
        %1743 = vmatpush1.msra.mxu0 0.0
        %1744 = vmatprep.subr.mxu0 0.0
        %1745 = vmatpush1.msra.mxu0 0.0
        %1746 = vmatprep.subr.mxu0 0.0
        %1747 = vmatpush1.msra.mxu0 0.0
        %1748 = vmatprep.subr.mxu0 0.0
        %1749 = vmatpush1.msra.mxu0 0.0
        %1750 = vmatprep.subr.mxu0 0.0
        %1751 = vmatpush1.msra.mxu0 0.0
        %1752 = vmatprep.subr.mxu0 0.0
        %1753 = vmatpush1.msra.mxu0 0.0
        %1754 = vmatprep.subr.mxu0 0.0
        %1755 = vmatpush1.msra.mxu0 0.0
        %1756 = vmatprep.subr.mxu0 0.0
        %1757 = vmatpush1.msra.mxu0 0.0
        %1758 = vmatprep.subr.mxu0 0.0
        %1759 = vmatpush1.msra.mxu0 0.0
        %1760 = vmatprep.subr.mxu0 0.0
        %1761 = vmatpush1.msra.mxu0 0.0
        %1762 = vmatprep.subr.mxu0 0.0
        %1763 = vmatpush1.msra.mxu0 0.0
        %1764 = vmatprep.subr.mxu0 0.0
        %1765 = vmatpush1.msra.mxu0 0.0
        %1766 = vmatprep.subr.mxu0 0.0
        %1767 = vmatpush1.msra.mxu0 0.0
        %1768 = vmatprep.subr.mxu0 0.0
        %1769 = vmatpush1.msra.mxu0 0.0
        %1770 = vmatprep.subr.mxu0 0.0
        %1771 = vmatpush1.msra.mxu0 0.0
        %1772 = vmatprep.subr.mxu0 0.0
        %1773 = vmatpush1.msra.mxu0 0.0
        %1774 = vmatprep.subr.mxu0 0.0
        %1775 = vmatpush1.msra.mxu0 0.0
        %1776 = vmatprep.subr.mxu0 0.0
        %1777 = vmatpush1.msra.mxu0 0.0
        %1778 = vmatprep.subr.mxu0 0.0
        %1779 = vmatpush1.msra.mxu0 0.0
        %1780 = vmatprep.subr.mxu0 0.0
        %1781 = vmatpush1.msra.mxu0 0.0
        %1782 = vmatprep.subr.mxu0 0.0
        %1783 = vmatpush1.msra.mxu0 0.0
        %1784 = vmatprep.subr.mxu0 0.0
        %1785 = vmatpush1.msra.mxu0 0.0
        %1786 = vmatprep.subr.mxu0 0.0
        %1787 = vmatpush1.msra.mxu0 0.0
        %1788 = vmatprep.subr.mxu0 0.0
        %1789 = vmatpush1.msra.mxu0 0.0
        %1790 = vmatprep.subr.mxu0 0.0
        %1791 = vmatpush1.msra.mxu0 0.0
        %1792 = vmatprep.mubr.f32.mxu0 0.0
        %1793 = vmatmul.mubr.f32.gmra.mrb[0].mxu0 %v1726
        %v1794 = vpop.f32.mrb[0].mxu0
        %v1795 = vadd.f32 %v1723, %v1794
        %v1796 = vpop.f32.mrb[0].mxu0
        %1797 = vdwg.mxu0
        %v1798 = vmul.f32 %v1795, 0.5
        %v1799 = vmul.f32 %v1795, 0.70710677
        %vm1800 = vcmp.ge.f32.partialorder %v1799, 0.0
        %v1801 = vsel %vm1800, 1.0, -1.0
        %v1802 = vand.u32 2147483647, %v1799
        %v1803 = vmul.f32 %v1802, 0.3275911
        %v1804 = vadd.f32 %v1803, 1.0
        %v1805 = vrcp.pop %v1804
        %v1806 = vmul.f32 1.0, %v1805
        %v1807 = vmul.f32 %v1806, 1.0614054
        %v1808 = vadd.f32 %v1807, -1.4531521
        %v1809 = vmul.f32 %v1808, %v1806
        %v1810 = vadd.f32 %v1809, 1.4214138
        %v1811 = vmul.f32 %v1810, %v1806
        %v1812 = vadd.f32 %v1811, -0.28449672
        %v1813 = vmul.f32 %v1812, %v1806
        %v1814 = vadd.f32 %v1813, 0.2548296
        %v1815 = vmul.f32 %v1814, %v1806
        %v1816 = vsub.f32 0.0, %v1802
        %v1817 = vmul.f32 %v1816, %v1802
        %v1818 = vmul.f32 %v1817, 1.442695
        %v1819 = vpow.pop %v1818
        %v1820 = vmul.f32 %v1815, %v1819
        %v1821 = vsub.f32 1.0, %v1820
        %v1822 = vmul.f32 %v1801, %v1821
        %v1823 = vadd.f32 %v1822, 1.0
        %v1824 = vmul.f32 %v1798, %v1823
        %v1826 = vlaneseq
        %v1827 = vshrl.u32 %v1826, 7
        %v1828 = vsub.s32 0, %v1827
        %v1829 = vrot.slane %v952, %v1828
        %vm1831 = vcmask 523264
        %v1833 = vsel %vm1831, %v1824, 0
        %1835 = vmatprep.subr.mxu0 0.0
        %1836 = vmatpush1.msra.mxu0 %v943
        %1837 = vmatprep.subr.mxu0 0.0
        %1838 = vmatpush1.msra.mxu0 %v944
        %1839 = vmatprep.subr.mxu0 0.0
        %1840 = vmatpush1.msra.mxu0 %v945
        %1841 = vmatprep.subr.mxu0 0.0
        %1842 = vmatpush1.msra.mxu0 %v946
        %1843 = vmatprep.subr.mxu0 0.0
        %1844 = vmatpush1.msra.mxu0 %v947
        %1845 = vmatprep.subr.mxu0 0.0
        %1846 = vmatpush1.msra.mxu0 %v948
        %1847 = vmatprep.subr.mxu0 0.0
        %1848 = vmatpush1.msra.mxu0 %v949
        %1849 = vmatprep.subr.mxu0 0.0
        %1850 = vmatpush1.msra.mxu0 %v950
        %1851 = vmatprep.subr.mxu0 0.0
        %1852 = vmatpush1.msra.mxu0 0.0
        %1853 = vmatprep.subr.mxu0 0.0
        %1854 = vmatpush1.msra.mxu0 0.0
        %1855 = vmatprep.subr.mxu0 0.0
        %1856 = vmatpush1.msra.mxu0 0.0
        %1857 = vmatprep.subr.mxu0 0.0
        %1858 = vmatpush1.msra.mxu0 0.0
        %1859 = vmatprep.subr.mxu0 0.0
        %1860 = vmatpush1.msra.mxu0 0.0
        %1861 = vmatprep.subr.mxu0 0.0
        %1862 = vmatpush1.msra.mxu0 0.0
        %1863 = vmatprep.subr.mxu0 0.0
        %1864 = vmatpush1.msra.mxu0 0.0
        %1865 = vmatprep.subr.mxu0 0.0
        %1866 = vmatpush1.msra.mxu0 0.0
        %1867 = vmatprep.subr.mxu0 0.0
        %1868 = vmatpush1.msra.mxu0 0.0
        %1869 = vmatprep.subr.mxu0 0.0
        %1870 = vmatpush1.msra.mxu0 0.0
        %1871 = vmatprep.subr.mxu0 0.0
        %1872 = vmatpush1.msra.mxu0 0.0
        %1873 = vmatprep.subr.mxu0 0.0
        %1874 = vmatpush1.msra.mxu0 0.0
        %1875 = vmatprep.subr.mxu0 0.0
        %1876 = vmatpush1.msra.mxu0 0.0
        %1877 = vmatprep.subr.mxu0 0.0
        %1878 = vmatpush1.msra.mxu0 0.0
        %1879 = vmatprep.subr.mxu0 0.0
        %1880 = vmatpush1.msra.mxu0 0.0
        %1881 = vmatprep.subr.mxu0 0.0
        %1882 = vmatpush1.msra.mxu0 0.0
        %1883 = vmatprep.subr.mxu0 0.0
        %1884 = vmatpush1.msra.mxu0 0.0
        %1885 = vmatprep.subr.mxu0 0.0
        %1886 = vmatpush1.msra.mxu0 0.0
        %1887 = vmatprep.subr.mxu0 0.0
        %1888 = vmatpush1.msra.mxu0 0.0
        %1889 = vmatprep.subr.mxu0 0.0
        %1890 = vmatpush1.msra.mxu0 0.0
        %1891 = vmatprep.subr.mxu0 0.0
        %1892 = vmatpush1.msra.mxu0 0.0
        %1893 = vmatprep.subr.mxu0 0.0
        %1894 = vmatpush1.msra.mxu0 0.0
        %1895 = vmatprep.subr.mxu0 0.0
        %1896 = vmatpush1.msra.mxu0 0.0
        %1897 = vmatprep.subr.mxu0 0.0
        %1898 = vmatpush1.msra.mxu0 0.0
        %1899 = vmatprep.mubr.f32.mxu0 0.0
        %1900 = vmatmul.mubr.f32.gmra.mrb[0].mxu0 %v1833
        %v1901 = vpop.f32.mrb[0].mxu0
        %v1902 = vadd.f32 %v1829, %v1901
        %v1903 = vpop.f32.mrb[0].mxu0
        %1904 = vdwg.mxu0
        %v1905 = vadd.f32 %v1691, %v1902
        %1906 = vst.msk [vmem:[#allocation2] sm:$0xff] %vm953, %v1905
        %1907 = vst.msk [vmem:[%s879] sm:$0xff] %vm953, %v1905
        %s1908 = sand.u32 %s517, 1
        %s1909 = scalar_lea.sflag [#allocation5], %s1908
        %s1910 = sand.u32 %s517, 1
        %s1911 = smul.addr %s1910, 8
        %s1912 = scalar_lea.vmem [#allocation24], %s1911
        // Predicated region
        $region161: #{tpu_custom_call.1} parent=103 // pred_check
          %p1913 = pneg %p527
        $region162: #{tpu_custom_call.1} parent=103 // pred_check_branch
          %1915 = sbr.rel (%p1913) target = $region164
        $region163: #{tpu_custom_call.1} parent=103 // pred_region
          %s1917 = ssub.s32 128, 128
          %1918 = vsyncadd %s1909, %s1917
          %s1919 = smul.addr %s50, 128
          %s1920 = scalar_lea.hbm %s21, %s1919
          %s1922 = sshll.u32 %s1912, 4
          %s1923 = int_to_ptr.vmem [resolvable:$true] %s1922
          %1925 = dma.vmem_to_hbm [thread:$0]  %s1923, 128, %s1920, %s1909
        $region164: #{tpu_custom_call.1} parent=103 // pred_fallthru
          _
      $region104: #{tpu_custom_call.1} parent=5 // pred_fallthru
        _
      %p1926 = scmp.le.s32.totalorder 2, %s41
      // Predicated region
      $region165: #{tpu_custom_call.1} parent=5 // pred_check
        %p1927 = pneg %p1926
      $region166: #{tpu_custom_call.1} parent=5 // pred_check_branch
        %1929 = sbr.rel (%p1927) target = $region168
      $region167: #{tpu_custom_call.1} parent=5 // pred_region
        %s1930 = ssub.s32 %s41, 2
        // Predicated region
        $region169: #{tpu_custom_call.1} parent=167 // pred_check
          %p1931 = pneg %p533
        $region170: #{tpu_custom_call.1} parent=167 // pred_check_branch
          %1933 = sbr.rel (%p1931) target = $region172
        $region171: #{tpu_custom_call.1} parent=167 // pred_region
          %s1934 = sand.u32 %s518, 1
          %s1935 = scalar_lea.sflag [#allocation5], %s1934
          %s1936 = sand.u32 %s518, 1
          %s1937 = smul.addr %s1936, 8
          %s1938 = scalar_lea.vmem [#allocation24], %s1937
          %1939 = dma.done %s1935, 128
        $region172: #{tpu_custom_call.1} parent=167 // pred_fallthru
          _
      $region168: #{tpu_custom_call.1} parent=5 // pred_fallthru
        _
    $region6: #{tpu_custom_call.1} parent=1 // loop_footer
      %s45 = sadd.s32 1, %s41
    $region7: #{tpu_custom_call.1} parent=1 // loop_footer_branch
      %40 = sbr.rel target = $region3
    $region8: #{tpu_custom_call.1} parent=1 // loop_exit
      _
    %1940 = vsyncpa [#allocation4], 1
    %s1941 = scalar_lea.sflag [#allocation4], 1
    %1942 = vsyncpa %s1941, 1
    %1943 = vsyncpa [#allocation7], 1
    %s1944 = scalar_lea.sflag [#allocation7], 1
    %1945 = vsyncpa %s1944, 1
    %1946 = vsyncpa [#allocation10], 1
    %1947 = vsyncpa [#allocation13], 1
    %1948 = vsyncpa [#allocation16], 1
    %1949 = vsyncpa [#allocation19], 1
    %1950 = vsyncpa [#allocation22], 1
    %1951 = vsyncpa [#allocation5], 1
    %s1952 = scalar_lea.sflag [#allocation5], 1
    %1953 = vsyncpa %s1952, 1

</llo_original>
